<compile_context>
chip_gen: v7x
topology: tpu7x:2x2x1
jax: 0.10.0
libtpu: 0.0.40
codegen_flags: <defaults>
</compile_context>

<pallas_src>
import math
import functools

import jax
import jax.numpy as jnp
from jax.experimental import pallas as pl
from jax.experimental.pallas import tpu as pltpu


def _layernorm(v, gamma, beta, eps=1e-5):
    mu = jnp.mean(v, axis=-1, keepdims=True)
    var = jnp.mean((v - mu) ** 2, axis=-1, keepdims=True)
    return (v - mu) * jax.lax.rsqrt(var + eps) * gamma + beta


def act_encoder_layer_kernel(
    x_ref, pos_ref,
    wqk_ref, wv_ref, wo_ref, w1_ref, w2_ref,
    bqk_ref, b1_ref, pvec_ref,
    o_ref,
    *, n_heads: int, batch: int, pre_norm: bool,
):
    x = x_ref[...]              # (S*B, D)   rows ordered as s*B + b
    pos = pos_ref[...]          # (S*B, D)
    SB, D = x.shape
    H = n_heads
    Dh = D // H
    scale = 1.0 / math.sqrt(Dh)

    # Packed small (1, D) params: [bv, bo, b2, g1, be1, g2, be2]
    pvec = pvec_ref[...]
    bv, bo, b2 = pvec[0:1], pvec[1:2], pvec[2:3]
    g1, be1, g2, be2 = pvec[3:4], pvec[4:5], pvec[5:6], pvec[6:7]

    # ---- self attention -------------------------------------------------
    skip = x
    xn = _layernorm(x, g1, be1) if pre_norm else x
    qk_in = xn + pos            # q = k = x + pos_embed ; value = x

    # Fused Q|K projection (N = 2D) and V projection, weights pre-transposed.
    qk = jnp.dot(qk_in, wqk_ref[...], preferred_element_type=jnp.float32) + bqk_ref[...]
    v = jnp.dot(xn, wv_ref[...], preferred_element_type=jnp.float32) + bv

    q = qk[:, :D]
    k = qk[:, D:]

    # Head-batched attention: (S*B, D) -> (H, S*B, Dh)
    qh = jnp.transpose(q.reshape(SB, H, Dh), (1, 0, 2))
    kh = jnp.transpose(k.reshape(SB, H, Dh), (1, 0, 2))
    vh = jnp.transpose(v.reshape(SB, H, Dh), (1, 0, 2))

    scores = jnp.einsum("hqd,hkd->hqk", qh, kh,
                        preferred_element_type=jnp.float32) * scale   # (H, SB, SB)

    # Mask attention across different batch elements (row r belongs to batch r % B).
    ri = jax.lax.broadcasted_iota(jnp.int32, (1, SB, SB), 1)
    ci = jax.lax.broadcasted_iota(jnp.int32, (1, SB, SB), 2)
    same_batch = (ri % batch) == (ci % batch)
    scores = jnp.where(same_batch, scores, jnp.float32(-1e30))

    m = jnp.max(scores, axis=-1, keepdims=True)
    p = jnp.exp(scores - m)
    denom = jnp.sum(p, axis=-1, keepdims=True)
    p = p * pl.reciprocal(denom, approx=True)

    ctx = jnp.einsum("hqk,hkd->hqd", p, vh,
                     preferred_element_type=jnp.float32)              # (H, SB, Dh)
    attn = jnp.transpose(ctx, (1, 0, 2)).reshape(SB, D)
    attn = jnp.dot(attn, wo_ref[...], preferred_element_type=jnp.float32) + bo

    x1 = skip + attn            # dropout1 == identity

    # ---- feed-forward ----------------------------------------------------
    if pre_norm:
        skip2 = x1
        xn2 = _layernorm(x1, g2, be2)
    else:
        xn2 = _layernorm(x1, g1, be1)
        skip2 = xn2

    h1 = jnp.dot(xn2, w1_ref[...], preferred_element_type=jnp.float32) + b1_ref[...]
    h1 = jnp.maximum(h1, 0.0)   # relu (feedforward_activation='relu'); dropout == identity
    ff = jnp.dot(h1, w2_ref[...], preferred_element_type=jnp.float32) + b2

    x2 = skip2 + ff             # dropout2 == identity
    if not pre_norm:
        x2 = _layernorm(x2, g2, be2)

    o_ref[...] = x2.astype(o_ref.dtype)


def act_encoder_layer(x_sbd, pos_sbd, params, *, n_heads: int, pre_norm: bool):
    """x_sbd, pos_sbd: (S, B, D) float32 (PyTorch MultiheadAttention layout)."""
    S, B, D = x_sbd.shape
    Dff = params["w1"].shape[0]
    SB = S * B

    # (S, B, D) -> (S*B, D) is a contiguous (free) reshape; no transpose needed.
    x2d = x_sbd.reshape(SB, D)
    pos2d = pos_sbd.reshape(SB, D)

    # Pre-transpose / pre-pack parameters (free wrapper work).
    wqkv = params["wqkv"]
    wqk_t = jnp.transpose(wqkv[: 2 * D])          # (D, 2D)  fused [Wq | Wk]
    wv_t = jnp.transpose(wqkv[2 * D:])            # (D, D)
    wo_t = jnp.transpose(params["wo"])            # (D, D)
    w1_t = jnp.transpose(params["w1"])            # (D, Dff)
    w2_t = jnp.transpose(params["w2"])            # (Dff, D)
    bqk = params["bqkv"][:, : 2 * D]              # (1, 2D)
    bv = params["bqkv"][:, 2 * D:]                # (1, D)
    b1 = params["b1"]                             # (1, Dff)
    pvec = jnp.concatenate(
        [bv, params["bo"], params["b2"],
         params["g1"], params["be1"], params["g2"], params["be2"]],
        axis=0)                                   # (7, D)

    kernel = functools.partial(
        act_encoder_layer_kernel, n_heads=n_heads, batch=B, pre_norm=pre_norm)

    vmem = pl.BlockSpec(memory_space=pltpu.MemorySpace.VMEM)
    out2d = pl.pallas_call(
        kernel,
        out_shape=jax.ShapeDtypeStruct((SB, D), jnp.float32),
        in_specs=[vmem] * 10,
        out_specs=vmem,
    )(x2d, pos2d, wqk_t, wv_t, wo_t, w1_t, w2_t, bqk, b1, pvec)

    return out2d.reshape(S, B, D)                 # back to (S, B, D), free reshape


def _reference(x_sbd, pos_sbd, params, *, n_heads, pre_norm):
    """Pure-JAX reference mirroring the PyTorch forward (dropout=identity)."""
    D = x_sbd.shape[-1]
    Dh = D // n_heads

    def ln(v, g, b):
        mu = jnp.mean(v, -1, keepdims=True)
        var = jnp.mean((v - mu) ** 2, -1, keepdims=True)
        return (v - mu) / jnp.sqrt(var + 1e-5) * g[0] + b[0]

    x = x_sbd
    skip = x
    if pre_norm:
        x = ln(x, params["g1"], params["be1"])
    qk = x + pos_sbd
    wqkv, bqkv = params["wqkv"], params["bqkv"][0]
    q = qk @ wqkv[:D].T + bqkv[:D]
    k = qk @ wqkv[D:2 * D].T + bqkv[D:2 * D]
    v = x @ wqkv[2 * D:].T + bqkv[2 * D:]

    S, B, _ = q.shape

    def split(t):  # (S,B,D) -> (B,H,S,Dh)
        return jnp.transpose(t.reshape(S, B, n_heads, Dh), (1, 2, 0, 3))

    qh, kh, vh = split(q), split(k), split(v)
    scores = jnp.einsum("bhsd,bhtd->bhst", qh, kh) / math.sqrt(Dh)
    p = jax.nn.softmax(scores, axis=-1)
    oh = jnp.einsum("bhst,bhtd->bhsd", p, vh)
    attn = jnp.transpose(oh, (2, 0, 1, 3)).reshape(S, B, D)
    attn = attn @ params["wo"].T + params["bo"][0]

    x = skip + attn
    if pre_norm:
        skip = x
        x = ln(x, params["g2"], params["be2"])
    else:
        x = ln(x, params["g1"], params["be1"])
        skip = x
    h = jnp.maximum(x @ params["w1"].T + params["b1"][0], 0.0)
    x = h @ params["w2"].T + params["b2"][0]
    x = skip + x
    if not pre_norm:
        x = ln(x, params["g2"], params["be2"])
    return x


if __name__ == "__main__":
    # Small shapes consistent with ACTEncoderLayer's forward:
    #   sequence S=8, batch B=2, dim_model D=32, n_heads=4, dim_feedforward=64
    S, B, D, H, DFF = 8, 2, 32, 4, 64

    key = jax.random.PRNGKey(0)
    keys = jax.random.split(key, 12)
    params = {
        "wqkv": 0.1 * jax.random.normal(keys[0], (3 * D, D), jnp.float32),
        "bqkv": 0.1 * jax.random.normal(keys[1], (1, 3 * D), jnp.float32),
        "wo":   0.1 * jax.random.normal(keys[2], (D, D), jnp.float32),
        "bo":   0.1 * jax.random.normal(keys[3], (1, D), jnp.float32),
        "w1":   0.1 * jax.random.normal(keys[4], (DFF, D), jnp.float32),
        "b1":   0.1 * jax.random.normal(keys[5], (1, DFF), jnp.float32),
        "w2":   0.1 * jax.random.normal(keys[6], (D, DFF), jnp.float32),
        "b2":   0.1 * jax.random.normal(keys[7], (1, D), jnp.float32),
        "g1":   jnp.ones((1, D), jnp.float32),
        "be1":  jnp.zeros((1, D), jnp.float32),
        "g2":   jnp.ones((1, D), jnp.float32),
        "be2":  jnp.zeros((1, D), jnp.float32),
    }

    x = jax.random.normal(keys[8], (S, B, D), jnp.float32)
    pos = jax.random.normal(keys[9], (S, B, D), jnp.float32)

    # ACT default: post-norm
    out = act_encoder_layer(x, pos, params, n_heads=H, pre_norm=False)
    out = jax.block_until_ready(out)
    ref = _reference(x, pos, params, n_heads=H, pre_norm=False)
    assert out.shape == (S, B, D)
    assert jnp.allclose(out, ref, atol=2e-3, rtol=2e-3), "post-norm mismatch vs JAX reference"

    # Also exercise the pre-norm branch.
    out_pre = jax.block_until_ready(
        act_encoder_layer(x, pos, params, n_heads=H, pre_norm=True))
    ref_pre = _reference(x, pos, params, n_heads=H, pre_norm=True)
    assert jnp.allclose(out_pre, ref_pre, atol=2e-3, rtol=2e-3), "pre-norm mismatch vs JAX reference"

    print("KERNEL_OK")
</pallas_src>

<mosaic_0001>
module attributes {stable_mosaic.version = 11 : i64} {
  func.func @act_encoder_layer_kernel(%arg0: memref<16x32xf32, #tpu.memory_space<vmem>>, %arg1: memref<16x32xf32, #tpu.memory_space<vmem>>, %arg2: memref<32x64xf32, #tpu.memory_space<vmem>>, %arg3: memref<32x32xf32, #tpu.memory_space<vmem>>, %arg4: memref<32x32xf32, #tpu.memory_space<vmem>>, %arg5: memref<32x64xf32, #tpu.memory_space<vmem>>, %arg6: memref<64x32xf32, #tpu.memory_space<vmem>>, %arg7: memref<1x64xf32, #tpu.memory_space<vmem>>, %arg8: memref<1x64xf32, #tpu.memory_space<vmem>>, %arg9: memref<7x32xf32, #tpu.memory_space<vmem>>, %arg10: memref<16x32xf32, #tpu.memory_space<vmem>>) attributes {dimension_semantics = [], scalar_prefetch = 0 : i64, scratch_operands = 0 : i64, tpu.core_type = #tpu.core_type<tc>} {
    %c0 = arith.constant 0 : index
    %c0_0 = arith.constant 0 : index
    %0 = vector.load %arg0[%c0, %c0_0] : memref<16x32xf32, #tpu.memory_space<vmem>>, vector<16x32xf32>
    %c0_1 = arith.constant 0 : index
    %c0_2 = arith.constant 0 : index
    %1 = vector.load %arg1[%c0_1, %c0_2] : memref<16x32xf32, #tpu.memory_space<vmem>>, vector<16x32xf32>
    %c0_3 = arith.constant 0 : index
    %c0_4 = arith.constant 0 : index
    %2 = vector.load %arg9[%c0_3, %c0_4] : memref<7x32xf32, #tpu.memory_space<vmem>>, vector<7x32xf32>
    %3 = vector.extract_strided_slice %2 {offsets = [0, 0], sizes = [1, 32], strides = [1, 1]} : vector<7x32xf32> to vector<1x32xf32>
    %4 = vector.extract_strided_slice %2 {offsets = [1, 0], sizes = [1, 32], strides = [1, 1]} : vector<7x32xf32> to vector<1x32xf32>
    %5 = vector.extract_strided_slice %2 {offsets = [2, 0], sizes = [1, 32], strides = [1, 1]} : vector<7x32xf32> to vector<1x32xf32>
    %6 = vector.extract_strided_slice %2 {offsets = [3, 0], sizes = [1, 32], strides = [1, 1]} : vector<7x32xf32> to vector<1x32xf32>
    %7 = vector.extract_strided_slice %2 {offsets = [4, 0], sizes = [1, 32], strides = [1, 1]} : vector<7x32xf32> to vector<1x32xf32>
    %8 = vector.extract_strided_slice %2 {offsets = [5, 0], sizes = [1, 32], strides = [1, 1]} : vector<7x32xf32> to vector<1x32xf32>
    %9 = vector.extract_strided_slice %2 {offsets = [6, 0], sizes = [1, 32], strides = [1, 1]} : vector<7x32xf32> to vector<1x32xf32>
    %10 = arith.addf %0, %1 : vector<16x32xf32>
    %c0_5 = arith.constant 0 : index
    %c0_6 = arith.constant 0 : index
    %11 = vector.load %arg2[%c0_5, %c0_6] : memref<32x64xf32, #tpu.memory_space<vmem>>, vector<32x64xf32>
    %cst = arith.constant dense<0.000000e+00> : vector<16x64xf32>
    %12 = tpu.matmul %10, %11, %cst {dimension_numbers = #tpu.dot_dimension_numbers<[1], [0], [0], [1], [0, 0, 1, 1], [], []>} : vector<16x32xf32>, vector<32x64xf32>, vector<16x64xf32> -> vector<16x64xf32>
    %c0_7 = arith.constant 0 : index
    %c0_8 = arith.constant 0 : index
    %13 = vector.load %arg7[%c0_7, %c0_8] : memref<1x64xf32, #tpu.memory_space<vmem>>, vector<1x64xf32>
    %14 = vector.broadcast %13 : vector<1x64xf32> to vector<16x64xf32>
    %15 = arith.addf %12, %14 : vector<16x64xf32>
    %c0_9 = arith.constant 0 : index
    %c0_10 = arith.constant 0 : index
    %16 = vector.load %arg3[%c0_9, %c0_10] : memref<32x32xf32, #tpu.memory_space<vmem>>, vector<32x32xf32>
    %cst_11 = arith.constant dense<0.000000e+00> : vector<16x32xf32>
    %17 = tpu.matmul %0, %16, %cst_11 {dimension_numbers = #tpu.dot_dimension_numbers<[1], [0], [0], [1], [0, 0, 1, 1], [], []>} : vector<16x32xf32>, vector<32x32xf32>, vector<16x32xf32> -> vector<16x32xf32>
    %18 = vector.broadcast %3 : vector<1x32xf32> to vector<16x32xf32>
    %19 = arith.addf %17, %18 : vector<16x32xf32>
    %20 = vector.extract_strided_slice %15 {offsets = [0, 0], sizes = [16, 32], strides = [1, 1]} : vector<16x64xf32> to vector<16x32xf32>
    %21 = vector.extract_strided_slice %15 {offsets = [0, 32], sizes = [16, 32], strides = [1, 1]} : vector<16x64xf32> to vector<16x32xf32>
    %22 = vector.shape_cast %20 : vector<16x32xf32> to vector<16x4x8xf32>
    %23 = tpu.transpose %22, [1, 0, 2] : vector<16x4x8xf32> -> vector<4x16x8xf32>
    %24 = vector.shape_cast %21 : vector<16x32xf32> to vector<16x4x8xf32>
    %25 = tpu.transpose %24, [1, 0, 2] : vector<16x4x8xf32> -> vector<4x16x8xf32>
    %26 = vector.shape_cast %19 : vector<16x32xf32> to vector<16x4x8xf32>
    %27 = tpu.transpose %26, [1, 0, 2] : vector<16x4x8xf32> -> vector<4x16x8xf32>
    "tpu.trace_start"() <{level = 10 : i32, message = "hqd,hkd->hqk"}> : () -> ()
    %cst_12 = arith.constant dense<0.000000e+00> : vector<4x16x16xf32>
    %28 = tpu.matmul %23, %25, %cst_12 {dimension_numbers = #tpu.dot_dimension_numbers<[2], [2], [1], [1], [0, 0, 0, 1, 1, 1], [0], [0]>} : vector<4x16x8xf32>, vector<4x16x8xf32>, vector<4x16x16xf32> -> vector<4x16x16xf32>
    "tpu.trace_stop"() : () -> ()
    %cst_13 = arith.constant 0.353553385 : f32
    %29 = vector.broadcast %cst_13 : f32 to vector<4x16x16xf32>
    %30 = arith.mulf %28, %29 : vector<4x16x16xf32>
    %31 = tpu.iota {dimensions = array<i32: 1>} : vector<1x16x16xi32>
    %32 = tpu.iota {dimensions = array<i32: 2>} : vector<1x16x16xi32>
    %c2_i32 = arith.constant 2 : i32
    %c0_i32 = arith.constant 0 : i32
    %33 = arith.cmpi eq, %c2_i32, %c0_i32 : i32
    %c1_i32 = arith.constant 1 : i32
    %34 = arith.select %33, %c1_i32, %c2_i32 : i32
    %35 = vector.broadcast %34 : i32 to vector<1x16x16xi32>
    %36 = arith.remsi %31, %35 : vector<1x16x16xi32>
    %c0_i32_14 = arith.constant 0 : i32
    %37 = vector.broadcast %c0_i32_14 : i32 to vector<1x16x16xi32>
    %38 = arith.cmpi ne, %36, %37 : vector<1x16x16xi32>
    %c0_i32_15 = arith.constant 0 : i32
    %39 = vector.broadcast %c0_i32_15 : i32 to vector<1x16x16xi32>
    %40 = arith.cmpi slt, %36, %39 : vector<1x16x16xi32>
    %c0_i32_16 = arith.constant 0 : i32
    %41 = arith.cmpi slt, %34, %c0_i32_16 : i32
    %42 = vector.broadcast %41 : i1 to vector<1x16x16xi1>
    %43 = vector.broadcast %42 : vector<1x16x16xi1> to vector<1x16x16xi1>
    %44 = arith.xori %40, %43 : vector<1x16x16xi1>
    %45 = arith.andi %44, %38 : vector<1x16x16xi1>
    %46 = vector.broadcast %34 : i32 to vector<1x16x16xi32>
    %47 = arith.addi %36, %46 : vector<1x16x16xi32>
    %48 = arith.select %45, %47, %36 : vector<1x16x16xi1>, vector<1x16x16xi32>
    %c2_i32_17 = arith.constant 2 : i32
    %c0_i32_18 = arith.constant 0 : i32
    %49 = arith.cmpi eq, %c2_i32_17, %c0_i32_18 : i32
    %c1_i32_19 = arith.constant 1 : i32
    %50 = arith.select %49, %c1_i32_19, %c2_i32_17 : i32
    %51 = vector.broadcast %50 : i32 to vector<1x16x16xi32>
    %52 = arith.remsi %32, %51 : vector<1x16x16xi32>
    %c0_i32_20 = arith.constant 0 : i32
    %53 = vector.broadcast %c0_i32_20 : i32 to vector<1x16x16xi32>
    %54 = arith.cmpi ne, %52, %53 : vector<1x16x16xi32>
    %c0_i32_21 = arith.constant 0 : i32
    %55 = vector.broadcast %c0_i32_21 : i32 to vector<1x16x16xi32>
    %56 = arith.cmpi slt, %52, %55 : vector<1x16x16xi32>
    %c0_i32_22 = arith.constant 0 : i32
    %57 = arith.cmpi slt, %50, %c0_i32_22 : i32
    %58 = vector.broadcast %57 : i1 to vector<1x16x16xi1>
    %59 = vector.broadcast %58 : vector<1x16x16xi1> to vector<1x16x16xi1>
    %60 = arith.xori %56, %59 : vector<1x16x16xi1>
    %61 = arith.andi %60, %54 : vector<1x16x16xi1>
    %62 = vector.broadcast %50 : i32 to vector<1x16x16xi32>
    %63 = arith.addi %52, %62 : vector<1x16x16xi32>
    %64 = arith.select %61, %63, %52 : vector<1x16x16xi1>, vector<1x16x16xi32>
    %65 = arith.cmpi eq, %48, %64 : vector<1x16x16xi32>
    %cst_23 = arith.constant -1.000000e+30 : f32
    %66 = vector.shape_cast %65 : vector<1x16x16xi1> to vector<1x16x16xi1>
    %67 = vector.broadcast %66 : vector<1x16x16xi1> to vector<4x16x16xi1>
    %68 = vector.broadcast %cst_23 : f32 to vector<4x16x16xf32>
    %69 = arith.select %67, %30, %68 : vector<4x16x16xi1>, vector<4x16x16xf32>
    %cst_24 = arith.constant dense<0xFF800000> : vector<4x16xf32>
    %70 = vector.multi_reduction <maximumf>, %69, %cst_24 [2] : vector<4x16x16xf32> to vector<4x16xf32>
    %71 = vector.shape_cast %70 : vector<4x16xf32> to vector<4x16x1xf32>
    %72 = vector.broadcast %71 : vector<4x16x1xf32> to vector<4x16x16xf32>
    %73 = arith.subf %69, %72 : vector<4x16x16xf32>
    %74 = math.exp %73 : vector<4x16x16xf32>
    %cst_25 = arith.constant dense<0.000000e+00> : vector<4x16xf32>
    %75 = vector.multi_reduction <add>, %74, %cst_25 [2] : vector<4x16x16xf32> to vector<4x16xf32>
    %76 = vector.shape_cast %75 : vector<4x16xf32> to vector<4x16x1xf32>
    %77 = tpu.reciprocal %76 {approx = true} : vector<4x16x1xf32> -> vector<4x16x1xf32>
    %78 = vector.broadcast %77 : vector<4x16x1xf32> to vector<4x16x16xf32>
    %79 = arith.mulf %74, %78 : vector<4x16x16xf32>
    "tpu.trace_start"() <{level = 10 : i32, message = "hqk,hkd->hqd"}> : () -> ()
    %cst_26 = arith.constant dense<0.000000e+00> : vector<4x16x8xf32>
    %80 = tpu.matmul %79, %27, %cst_26 {dimension_numbers = #tpu.dot_dimension_numbers<[2], [1], [1], [2], [0, 0, 0, 1, 1, 2], [0], [0]>} : vector<4x16x16xf32>, vector<4x16x8xf32>, vector<4x16x8xf32> -> vector<4x16x8xf32>
    "tpu.trace_stop"() : () -> ()
    %81 = tpu.transpose %80, [1, 0, 2] : vector<4x16x8xf32> -> vector<16x4x8xf32>
    %82 = vector.shape_cast %81 : vector<16x4x8xf32> to vector<16x32xf32>
    %c0_27 = arith.constant 0 : index
    %c0_28 = arith.constant 0 : index
    %83 = vector.load %arg4[%c0_27, %c0_28] : memref<32x32xf32, #tpu.memory_space<vmem>>, vector<32x32xf32>
    %cst_29 = arith.constant dense<0.000000e+00> : vector<16x32xf32>
    %84 = tpu.matmul %82, %83, %cst_29 {dimension_numbers = #tpu.dot_dimension_numbers<[1], [0], [0], [1], [0, 0, 1, 1], [], []>} : vector<16x32xf32>, vector<32x32xf32>, vector<16x32xf32> -> vector<16x32xf32>
    %85 = vector.broadcast %4 : vector<1x32xf32> to vector<16x32xf32>
    %86 = arith.addf %84, %85 : vector<16x32xf32>
    %87 = arith.addf %0, %86 : vector<16x32xf32>
    %cst_30 = arith.constant dense<0.000000e+00> : vector<16xf32>
    %88 = vector.multi_reduction <add>, %87, %cst_30 [1] : vector<16x32xf32> to vector<16xf32>
    %89 = vector.shape_cast %88 : vector<16xf32> to vector<16x1xf32>
    %cst_31 = arith.constant 3.200000e+01 : f32
    %90 = vector.broadcast %cst_31 : f32 to vector<16x1xf32>
    %91 = arith.divf %89, %90 : vector<16x1xf32>
    %92 = vector.broadcast %91 : vector<16x1xf32> to vector<16x32xf32>
    %93 = arith.subf %87, %92 : vector<16x32xf32>
    %94 = arith.mulf %93, %93 : vector<16x32xf32>
    %cst_32 = arith.constant dense<0.000000e+00> : vector<16xf32>
    %95 = vector.multi_reduction <add>, %94, %cst_32 [1] : vector<16x32xf32> to vector<16xf32>
    %96 = vector.shape_cast %95 : vector<16xf32> to vector<16x1xf32>
    %cst_33 = arith.constant 3.200000e+01 : f32
    %97 = vector.broadcast %cst_33 : f32 to vector<16x1xf32>
    %98 = arith.divf %96, %97 : vector<16x1xf32>
    %99 = vector.broadcast %91 : vector<16x1xf32> to vector<16x32xf32>
    %100 = arith.subf %87, %99 : vector<16x32xf32>
    %cst_34 = arith.constant 9.99999974E-6 : f32
    %101 = vector.broadcast %cst_34 : f32 to vector<16x1xf32>
    %102 = arith.addf %98, %101 : vector<16x1xf32>
    %103 = math.rsqrt %102 : vector<16x1xf32>
    %104 = vector.broadcast %103 : vector<16x1xf32> to vector<16x32xf32>
    %105 = arith.mulf %100, %104 : vector<16x32xf32>
    %106 = vector.broadcast %6 : vector<1x32xf32> to vector<16x32xf32>
    %107 = arith.mulf %105, %106 : vector<16x32xf32>
    %108 = vector.broadcast %7 : vector<1x32xf32> to vector<16x32xf32>
    %109 = arith.addf %107, %108 : vector<16x32xf32>
    %c0_35 = arith.constant 0 : index
    %c0_36 = arith.constant 0 : index
    %110 = vector.load %arg5[%c0_35, %c0_36] : memref<32x64xf32, #tpu.memory_space<vmem>>, vector<32x64xf32>
    %cst_37 = arith.constant dense<0.000000e+00> : vector<16x64xf32>
    %111 = tpu.matmul %109, %110, %cst_37 {dimension_numbers = #tpu.dot_dimension_numbers<[1], [0], [0], [1], [0, 0, 1, 1], [], []>} : vector<16x32xf32>, vector<32x64xf32>, vector<16x64xf32> -> vector<16x64xf32>
    %c0_38 = arith.constant 0 : index
    %c0_39 = arith.constant 0 : index
    %112 = vector.load %arg8[%c0_38, %c0_39] : memref<1x64xf32, #tpu.memory_space<vmem>>, vector<1x64xf32>
    %113 = vector.broadcast %112 : vector<1x64xf32> to vector<16x64xf32>
    %114 = arith.addf %111, %113 : vector<16x64xf32>
    %cst_40 = arith.constant 0.000000e+00 : f32
    %115 = vector.broadcast %cst_40 : f32 to vector<16x64xf32>
    %116 = arith.maximumf %114, %115 : vector<16x64xf32>
    %c0_41 = arith.constant 0 : index
    %c0_42 = arith.constant 0 : index
    %117 = vector.load %arg6[%c0_41, %c0_42] : memref<64x32xf32, #tpu.memory_space<vmem>>, vector<64x32xf32>
    %cst_43 = arith.constant dense<0.000000e+00> : vector<16x32xf32>
    %118 = tpu.matmul %116, %117, %cst_43 {dimension_numbers = #tpu.dot_dimension_numbers<[1], [0], [0], [1], [0, 0, 1, 1], [], []>} : vector<16x64xf32>, vector<64x32xf32>, vector<16x32xf32> -> vector<16x32xf32>
    %119 = vector.broadcast %5 : vector<1x32xf32> to vector<16x32xf32>
    %120 = arith.addf %118, %119 : vector<16x32xf32>
    %121 = arith.addf %109, %120 : vector<16x32xf32>
    %cst_44 = arith.constant dense<0.000000e+00> : vector<16xf32>
    %122 = vector.multi_reduction <add>, %121, %cst_44 [1] : vector<16x32xf32> to vector<16xf32>
    %123 = vector.shape_cast %122 : vector<16xf32> to vector<16x1xf32>
    %cst_45 = arith.constant 3.200000e+01 : f32
    %124 = vector.broadcast %cst_45 : f32 to vector<16x1xf32>
    %125 = arith.divf %123, %124 : vector<16x1xf32>
    %126 = vector.broadcast %125 : vector<16x1xf32> to vector<16x32xf32>
    %127 = arith.subf %121, %126 : vector<16x32xf32>
    %128 = arith.mulf %127, %127 : vector<16x32xf32>
    %cst_46 = arith.constant dense<0.000000e+00> : vector<16xf32>
    %129 = vector.multi_reduction <add>, %128, %cst_46 [1] : vector<16x32xf32> to vector<16xf32>
    %130 = vector.shape_cast %129 : vector<16xf32> to vector<16x1xf32>
    %cst_47 = arith.constant 3.200000e+01 : f32
    %131 = vector.broadcast %cst_47 : f32 to vector<16x1xf32>
    %132 = arith.divf %130, %131 : vector<16x1xf32>
    %133 = vector.broadcast %125 : vector<16x1xf32> to vector<16x32xf32>
    %134 = arith.subf %121, %133 : vector<16x32xf32>
    %cst_48 = arith.constant 9.99999974E-6 : f32
    %135 = vector.broadcast %cst_48 : f32 to vector<16x1xf32>
    %136 = arith.addf %132, %135 : vector<16x1xf32>
    %137 = math.rsqrt %136 : vector<16x1xf32>
    %138 = vector.broadcast %137 : vector<16x1xf32> to vector<16x32xf32>
    %139 = arith.mulf %134, %138 : vector<16x32xf32>
    %140 = vector.broadcast %8 : vector<1x32xf32> to vector<16x32xf32>
    %141 = arith.mulf %139, %140 : vector<16x32xf32>
    %142 = vector.broadcast %9 : vector<1x32xf32> to vector<16x32xf32>
    %143 = arith.addf %141, %142 : vector<16x32xf32>
    %c0_49 = arith.constant 0 : index
    %c0_50 = arith.constant 0 : index
    %144 = vector.load %arg10[%c0_49, %c0_50] : memref<16x32xf32, #tpu.memory_space<vmem>>, vector<16x32xf32>
    tpu.vector_store %arg10[%c0_49, %c0_50], %143 {strides = array<i32>} : memref<16x32xf32, #tpu.memory_space<vmem>>, vector<16x32xf32>,
    return
  }
}

</mosaic_0001>

<llo_original>
// kernel: tpu_custom_call.1
$region0: #{tpu_custom_call.1}
  #allocation0 [shape = 'u32[]', space=smem, size = 0x4, offset = 0x4, fixed_abs, tag = 'smem constant byte address 0x4 - core index']
  #allocation1 [shape = 'u32[144,128]{1,0:T(1,128)}', space=vmem, size = 0x12000, scoped, tag = 'internal scratch']
  %s0 = inlined_call_operand.hbm [shape: f32[16,32], index: 0, kind: input, shape index: {}]
  %s1 = inlined_call_operand.hbm [shape: f32[16,32], index: 1, kind: input, shape index: {}]
  %s2 = inlined_call_operand.vmem [shape: f32[32,64], index: 2, kind: input, shape index: {}]
  %s3 = inlined_call_operand.vmem [shape: f32[32,32], index: 3, kind: input, shape index: {}]
  %s4 = inlined_call_operand.vmem [shape: f32[32,32], index: 4, kind: input, shape index: {}]
  %s5 = inlined_call_operand.hbm [shape: f32[32,64], index: 5, kind: input, shape index: {}]
  %s6 = inlined_call_operand.vmem [shape: f32[64,32], index: 6, kind: input, shape index: {}]
  %s7 = inlined_call_operand.vmem [shape: f32[1,64], index: 7, kind: input, shape index: {}]
  %s8 = inlined_call_operand.vmem [shape: f32[1,64], index: 8, kind: input, shape index: {}]
  %s9 = inlined_call_operand.vmem [shape: f32[7,32], index: 9, kind: input, shape index: {}]
  %s10 = inlined_call_operand.hbm [shape: f32[16,32], index: 10, kind: output, shape index: {}]
  %s11 = sld [smem:[#allocation0]]
  $region62: #{tpu_custom_call.1} parent=0
    _
  %s13 = ssub.s32 1, %s11
  %s14 = scalar_select 0, %s13, %s11
  $region1: #{tpu_custom_call.1} parent=0
    #allocation2 [shape = 'u8[8192]{0}', space=vmem, size = 0x2000, scoped, tag = 'input window, operand 0, single buffered']
    #allocation3 [shape = 's32[1]{0}', space=sflag, size = 0x4, scoped, tag = 'scoped memory for tpu_custom_call.1']
    #allocation4 [shape = 's32[1]{0}', space=sflag, size = 0x4, scoped, tag = 'scoped memory for tpu_custom_call.1']
    #allocation5 [shape = 'u8[8192]{0}', space=vmem, size = 0x2000, scoped, tag = 'input window, operand 1, single buffered']
    #allocation6 [shape = 's32[1]{0}', space=sflag, size = 0x4, scoped, tag = 'scoped memory for tpu_custom_call.1']
    #allocation7 [shape = 'u8[16384]{0}', space=vmem, size = 0x4000, scoped, tag = 'input window, operand 5, single buffered']
    #allocation8 [shape = 'u8[8192]{0}', space=vmem, size = 0x2000, scoped, tag = 'output window, operand 0, single buffered']
    %15 = vsyncpa [#allocation3], 0
    %16 = vsyncpa [#allocation6], 0
    %17 = vsyncpa [#allocation4], 0
    // Predicated region
    $region2: #{tpu_custom_call.1} parent=1 // pred_check
      _
    $region3: #{tpu_custom_call.1} parent=1 // pred_check_branch
      %19 = sbr.rel (0) target = $region5
    $region4: #{tpu_custom_call.1} parent=1 // pred_region
      %s21 = ssub.s32 256, 256
      %22 = vsyncadd [#allocation3], %s21
      %s23 = sshll.u32 [#allocation2], 4
      %s24 = int_to_ptr.vmem [resolvable:$true] %s23
      %29 = dma.hbm_to_vmem [thread:$0]  %s0, 256, %s24, [#allocation3], 128, 128, 8
    $region5: #{tpu_custom_call.1} parent=1 // pred_fallthru
      _
    // Predicated region
    $region6: #{tpu_custom_call.1} parent=1 // pred_check
      _
    $region7: #{tpu_custom_call.1} parent=1 // pred_check_branch
      %31 = sbr.rel (0) target = $region9
    $region8: #{tpu_custom_call.1} parent=1 // pred_region
      %s33 = ssub.s32 256, 256
      %34 = vsyncadd [#allocation6], %s33
      %s35 = sshll.u32 [#allocation5], 4
      %s36 = int_to_ptr.vmem [resolvable:$true] %s35
      %41 = dma.hbm_to_vmem [thread:$0]  %s1, 256, %s36, [#allocation6], 128, 128, 8
    $region9: #{tpu_custom_call.1} parent=1 // pred_fallthru
      _
    // Predicated region
    $region10: #{tpu_custom_call.1} parent=1 // pred_check
      _
    $region11: #{tpu_custom_call.1} parent=1 // pred_check_branch
      %43 = sbr.rel (0) target = $region13
    $region12: #{tpu_custom_call.1} parent=1 // pred_region
      _
    $region13: #{tpu_custom_call.1} parent=1 // pred_fallthru
      _
    // Predicated region
    $region14: #{tpu_custom_call.1} parent=1 // pred_check
      _
    $region15: #{tpu_custom_call.1} parent=1 // pred_check_branch
      %45 = sbr.rel (0) target = $region17
    $region16: #{tpu_custom_call.1} parent=1 // pred_region
      _
    $region17: #{tpu_custom_call.1} parent=1 // pred_fallthru
      _
    // Predicated region
    $region18: #{tpu_custom_call.1} parent=1 // pred_check
      _
    $region19: #{tpu_custom_call.1} parent=1 // pred_check_branch
      %47 = sbr.rel (0) target = $region21
    $region20: #{tpu_custom_call.1} parent=1 // pred_region
      _
    $region21: #{tpu_custom_call.1} parent=1 // pred_fallthru
      _
    // Predicated region
    $region22: #{tpu_custom_call.1} parent=1 // pred_check
      _
    $region23: #{tpu_custom_call.1} parent=1 // pred_check_branch
      %49 = sbr.rel (0) target = $region25
    $region24: #{tpu_custom_call.1} parent=1 // pred_region
      %s51 = ssub.s32 512, 512
      %52 = vsyncadd [#allocation6], %s51
      %s53 = sshll.u32 [#allocation7], 4
      %s54 = int_to_ptr.vmem [resolvable:$true] %s53
      %59 = dma.hbm_to_vmem [thread:$0]  %s5, 512, %s54, [#allocation6], 128, 128, 8
    $region25: #{tpu_custom_call.1} parent=1 // pred_fallthru
      _
    // Predicated region
    $region26: #{tpu_custom_call.1} parent=1 // pred_check
      _
    $region27: #{tpu_custom_call.1} parent=1 // pred_check_branch
      %61 = sbr.rel (0) target = $region29
    $region28: #{tpu_custom_call.1} parent=1 // pred_region
      _
    $region29: #{tpu_custom_call.1} parent=1 // pred_fallthru
      _
    // Predicated region
    $region30: #{tpu_custom_call.1} parent=1 // pred_check
      _
    $region31: #{tpu_custom_call.1} parent=1 // pred_check_branch
      %63 = sbr.rel (0) target = $region33
    $region32: #{tpu_custom_call.1} parent=1 // pred_region
      _
    $region33: #{tpu_custom_call.1} parent=1 // pred_fallthru
      _
    // Predicated region
    $region34: #{tpu_custom_call.1} parent=1 // pred_check
      _
    $region35: #{tpu_custom_call.1} parent=1 // pred_check_branch
      %65 = sbr.rel (0) target = $region37
    $region36: #{tpu_custom_call.1} parent=1 // pred_region
      _
    $region37: #{tpu_custom_call.1} parent=1 // pred_fallthru
      _
    // Predicated region
    $region38: #{tpu_custom_call.1} parent=1 // pred_check
      _
    $region39: #{tpu_custom_call.1} parent=1 // pred_check_branch
      %67 = sbr.rel (0) target = $region41
    $region40: #{tpu_custom_call.1} parent=1 // pred_region
      _
    $region41: #{tpu_custom_call.1} parent=1 // pred_fallthru
      _
    // Predicated region
    $region42: #{tpu_custom_call.1} parent=1 // pred_check
      _
    $region43: #{tpu_custom_call.1} parent=1 // pred_check_branch
      %69 = sbr.rel (0) target = $region45
    $region44: #{tpu_custom_call.1} parent=1 // pred_region
      %70 = dma.done [#allocation3], 256
    $region45: #{tpu_custom_call.1} parent=1 // pred_fallthru
      _
    // Predicated region
    $region46: #{tpu_custom_call.1} parent=1 // pred_check
      _
    $region47: #{tpu_custom_call.1} parent=1 // pred_check_branch
      %72 = sbr.rel (0) target = $region49
    $region48: #{tpu_custom_call.1} parent=1 // pred_region
      %73 = dma.done [#allocation6], 256
    $region49: #{tpu_custom_call.1} parent=1 // pred_fallthru
      _
    // Predicated region
    $region50: #{tpu_custom_call.1} parent=1 // pred_check
      _
    $region51: #{tpu_custom_call.1} parent=1 // pred_check_branch
      %75 = sbr.rel (0) target = $region53
    $region52: #{tpu_custom_call.1} parent=1 // pred_region
      %76 = dma.done [#allocation6], 512
    $region53: #{tpu_custom_call.1} parent=1 // pred_fallthru
      _
    %v77 = vld [vmem:[#allocation2] sm:$0xff]
    %v78 = vld [vmem:[#allocation2 + $0x8] sm:$0xff]
    %v79 = vld [vmem:[#allocation5] sm:$0xff]
    %v80 = vld [vmem:[#allocation5 + $0x8] sm:$0xff]
    %v81 = vld [vmem:[%s9] sm:$0x7f]
    %v82 = vadd.f32 %v77, %v79
    %v83 = vadd.f32 %v78, %v80
    %v84 = vld [vmem:[%s2] sm:$0xff]
    %v85 = vld [vmem:[%s2 + $0x8] sm:$0xff]
    %v86 = vld [vmem:[%s2 + $0x10] sm:$0xff]
    %v87 = vld [vmem:[%s2 + $0x18] sm:$0xff]
    %v88 = vld [vmem:[%s7] sm:$0x1]
    %v90 = vlaneseq
    %v91 = vshrl.u32 %v90, 7
    %v92 = vsub.s32 0, %v91
    %v93 = vrot.slane %v88, %v92
    %vm95 = vcmask 261120
    %v97 = vsel %vm95, %v82, 0
    %v100 = vsel %vm95, %v83, 0
    %102 = vmatprep.subr.mxu0 0.0
    %103 = vmatpush1.msra.mxu0 %v84
    %104 = vmatprep.subr.mxu0 0.0
    %105 = vmatpush1.msra.mxu0 %v85
    %106 = vmatprep.subr.mxu0 0.0
    %107 = vmatpush1.msra.mxu0 %v86
    %108 = vmatprep.subr.mxu0 0.0
    %109 = vmatpush1.msra.mxu0 %v87
    %110 = vmatprep.subr.mxu0 0.0
    %111 = vmatpush1.msra.mxu0 0.0
    %112 = vmatprep.subr.mxu0 0.0
    %113 = vmatpush1.msra.mxu0 0.0
    %114 = vmatprep.subr.mxu0 0.0
    %115 = vmatpush1.msra.mxu0 0.0
    %116 = vmatprep.subr.mxu0 0.0
    %117 = vmatpush1.msra.mxu0 0.0
    %118 = vmatprep.subr.mxu0 0.0
    %119 = vmatpush1.msra.mxu0 0.0
    %120 = vmatprep.subr.mxu0 0.0
    %121 = vmatpush1.msra.mxu0 0.0
    %122 = vmatprep.subr.mxu0 0.0
    %123 = vmatpush1.msra.mxu0 0.0
    %124 = vmatprep.subr.mxu0 0.0
    %125 = vmatpush1.msra.mxu0 0.0
    %126 = vmatprep.subr.mxu0 0.0
    %127 = vmatpush1.msra.mxu0 0.0
    %128 = vmatprep.subr.mxu0 0.0
    %129 = vmatpush1.msra.mxu0 0.0
    %130 = vmatprep.subr.mxu0 0.0
    %131 = vmatpush1.msra.mxu0 0.0
    %132 = vmatprep.subr.mxu0 0.0
    %133 = vmatpush1.msra.mxu0 0.0
    %134 = vmatprep.subr.mxu0 0.0
    %135 = vmatpush1.msra.mxu0 0.0
    %136 = vmatprep.subr.mxu0 0.0
    %137 = vmatpush1.msra.mxu0 0.0
    %138 = vmatprep.subr.mxu0 0.0
    %139 = vmatpush1.msra.mxu0 0.0
    %140 = vmatprep.subr.mxu0 0.0
    %141 = vmatpush1.msra.mxu0 0.0
    %142 = vmatprep.subr.mxu0 0.0
    %143 = vmatpush1.msra.mxu0 0.0
    %144 = vmatprep.subr.mxu0 0.0
    %145 = vmatpush1.msra.mxu0 0.0
    %146 = vmatprep.subr.mxu0 0.0
    %147 = vmatpush1.msra.mxu0 0.0
    %148 = vmatprep.subr.mxu0 0.0
    %149 = vmatpush1.msra.mxu0 0.0
    %150 = vmatprep.subr.mxu0 0.0
    %151 = vmatpush1.msra.mxu0 0.0
    %152 = vmatprep.subr.mxu0 0.0
    %153 = vmatpush1.msra.mxu0 0.0
    %154 = vmatprep.subr.mxu0 0.0
    %155 = vmatpush1.msra.mxu0 0.0
    %156 = vmatprep.subr.mxu0 0.0
    %157 = vmatpush1.msra.mxu0 0.0
    %158 = vmatprep.subr.mxu0 0.0
    %159 = vmatpush1.msra.mxu0 0.0
    %160 = vmatprep.subr.mxu0 0.0
    %161 = vmatpush1.msra.mxu0 0.0
    %162 = vmatprep.subr.mxu0 0.0
    %163 = vmatpush1.msra.mxu0 0.0
    %164 = vmatprep.subr.mxu0 0.0
    %165 = vmatpush1.msra.mxu0 0.0
    %166 = vmatprep.mubr.f32.mxu0 0.0
    %167 = vmatmul.mubr.f32.gmra.mrb[0].mxu0 %v97
    %v168 = vpop.f32.mrb[0].mxu0
    %v169 = vadd.f32 %v93, %v168
    %v170 = vpop.f32.mrb[0].mxu0
    %171 = vmatprep.mubr.f32.mxu0 0.0
    %172 = vmatmul.mubr.f32.gmra.mrb[0].mxu0 %v100
    %v173 = vpop.f32.mrb[0].mxu0
    %v174 = vadd.f32 %v93, %v173
    %v175 = vpop.f32.mrb[0].mxu0
    %176 = vdwg.mxu0
    %v177 = vld [vmem:[%s3] sm:$0xff]
    %v178 = vld [vmem:[%s3 + $0x8] sm:$0xff]
    %v179 = vld [vmem:[%s3 + $0x10] sm:$0xff]
    %v180 = vld [vmem:[%s3 + $0x18] sm:$0xff]
    %v181 = vlaneseq
    %v182 = vshrl.u32 %v181, 7
    %v183 = vsub.s32 0, %v182
    %v184 = vrot.slane %v81, %v183
    %v186 = vsel %vm95, %v77, 0
    %v189 = vsel %vm95, %v78, 0
    %191 = vmatprep.subr.mxu0 0.0
    %192 = vmatpush1.msra.mxu0 %v177
    %193 = vmatprep.subr.mxu0 0.0
    %194 = vmatpush1.msra.mxu0 %v178
    %195 = vmatprep.subr.mxu0 0.0
    %196 = vmatpush1.msra.mxu0 %v179
    %197 = vmatprep.subr.mxu0 0.0
    %198 = vmatpush1.msra.mxu0 %v180
    %199 = vmatprep.subr.mxu0 0.0
    %200 = vmatpush1.msra.mxu0 0.0
    %201 = vmatprep.subr.mxu0 0.0
    %202 = vmatpush1.msra.mxu0 0.0
    %203 = vmatprep.subr.mxu0 0.0
    %204 = vmatpush1.msra.mxu0 0.0
    %205 = vmatprep.subr.mxu0 0.0
    %206 = vmatpush1.msra.mxu0 0.0
    %207 = vmatprep.subr.mxu0 0.0
    %208 = vmatpush1.msra.mxu0 0.0
    %209 = vmatprep.subr.mxu0 0.0
    %210 = vmatpush1.msra.mxu0 0.0
    %211 = vmatprep.subr.mxu0 0.0
    %212 = vmatpush1.msra.mxu0 0.0
    %213 = vmatprep.subr.mxu0 0.0
    %214 = vmatpush1.msra.mxu0 0.0
    %215 = vmatprep.subr.mxu0 0.0
    %216 = vmatpush1.msra.mxu0 0.0
    %217 = vmatprep.subr.mxu0 0.0
    %218 = vmatpush1.msra.mxu0 0.0
    %219 = vmatprep.subr.mxu0 0.0
    %220 = vmatpush1.msra.mxu0 0.0
    %221 = vmatprep.subr.mxu0 0.0
    %222 = vmatpush1.msra.mxu0 0.0
    %223 = vmatprep.subr.mxu0 0.0
    %224 = vmatpush1.msra.mxu0 0.0
    %225 = vmatprep.subr.mxu0 0.0
    %226 = vmatpush1.msra.mxu0 0.0
    %227 = vmatprep.subr.mxu0 0.0
    %228 = vmatpush1.msra.mxu0 0.0
    %229 = vmatprep.subr.mxu0 0.0
    %230 = vmatpush1.msra.mxu0 0.0
    %231 = vmatprep.subr.mxu0 0.0
    %232 = vmatpush1.msra.mxu0 0.0
    %233 = vmatprep.subr.mxu0 0.0
    %234 = vmatpush1.msra.mxu0 0.0
    %235 = vmatprep.subr.mxu0 0.0
    %236 = vmatpush1.msra.mxu0 0.0
    %237 = vmatprep.subr.mxu0 0.0
    %238 = vmatpush1.msra.mxu0 0.0
    %239 = vmatprep.subr.mxu0 0.0
    %240 = vmatpush1.msra.mxu0 0.0
    %241 = vmatprep.subr.mxu0 0.0
    %242 = vmatpush1.msra.mxu0 0.0
    %243 = vmatprep.subr.mxu0 0.0
    %244 = vmatpush1.msra.mxu0 0.0
    %245 = vmatprep.subr.mxu0 0.0
    %246 = vmatpush1.msra.mxu0 0.0
    %247 = vmatprep.subr.mxu0 0.0
    %248 = vmatpush1.msra.mxu0 0.0
    %249 = vmatprep.subr.mxu0 0.0
    %250 = vmatpush1.msra.mxu0 0.0
    %251 = vmatprep.subr.mxu0 0.0
    %252 = vmatpush1.msra.mxu0 0.0
    %253 = vmatprep.subr.mxu0 0.0
    %254 = vmatpush1.msra.mxu0 0.0
    %255 = vmatprep.mubr.f32.mxu0 0.0
    %256 = vmatmul.mubr.f32.gmra.mrb[0].mxu0 %v186
    %v257 = vpop.f32.mrb[0].mxu0
    %v258 = vadd.f32 %v184, %v257
    %v259 = vpop.f32.mrb[0].mxu0
    %260 = vmatprep.mubr.f32.mxu0 0.0
    %261 = vmatmul.mubr.f32.gmra.mrb[0].mxu0 %v189
    %v262 = vpop.f32.mrb[0].mxu0
    %v263 = vadd.f32 %v184, %v262
    %v264 = vpop.f32.mrb[0].mxu0
    %265 = vdwg.mxu0
    %268 = vrot.lane.b32.xlu0 %v169, 120
    %v269 = vpop.permute.xlu0 %268
    %270 = vrot.lane.b32.xlu0 %v174, 120
    %v271 = vpop.permute.xlu0 %270
    %274 = vrot.lane.b32.xlu0 %v169, 112
    %v275 = vpop.permute.xlu0 %274
    %276 = vrot.lane.b32.xlu0 %v174, 112
    %v277 = vpop.permute.xlu0 %276
    %280 = vrot.lane.b32.xlu0 %v169, 104
    %v281 = vpop.permute.xlu0 %280
    %282 = vrot.lane.b32.xlu0 %v174, 104
    %v283 = vpop.permute.xlu0 %282
    %v286 = vcombine.low %v169, %v275
    %v287 = vcombine.high %v169, %v275
    %v289 = vunpack.c.l.s4 1983009808
    %v290 = vunpack.c.0.s8 %v289
    %v291 = vlaneseq
    %v292 = vshrl.u32 %v291, 7
    %v293 = vsub.s32 %v290, %v292
    %v294 = vrot.slane %v286, %v293
    %v296 = vunpack.c.l.s4 1983009808
    %v297 = vunpack.c.0.s8 %v296
    %v298 = vlaneseq
    %v299 = vshrl.u32 %v298, 7
    %v300 = vsub.s32 %v297, %v299
    %v301 = vrot.slane %v287, %v300
    %v302 = vcombine.low %v269, %v281
    %v303 = vcombine.high %v269, %v281
    %v305 = vunpack.c.l.s4 1983009808
    %v306 = vunpack.c.0.s8 %v305
    %v307 = vlaneseq
    %v308 = vshrl.u32 %v307, 7
    %v309 = vsub.s32 %v306, %v308
    %v310 = vrot.slane %v302, %v309
    %v312 = vunpack.c.l.s4 1983009808
    %v313 = vunpack.c.0.s8 %v312
    %v314 = vlaneseq
    %v315 = vshrl.u32 %v314, 7
    %v316 = vsub.s32 %v313, %v315
    %v317 = vrot.slane %v303, %v316
    %v318 = vcombine.low %v294, %v310
    %v319 = vcombine.high %v294, %v310
    %v321 = vunpack.c.l.s4 1934713408
    %v322 = vunpack.c.0.s8 %v321
    %v323 = vlaneseq
    %v324 = vshrl.u32 %v323, 7
    %v325 = vsub.s32 %v322, %v324
    %v326 = vrot.slane %v318, %v325
    %v328 = vunpack.c.l.s4 1934713408
    %v329 = vunpack.c.0.s8 %v328
    %v330 = vlaneseq
    %v331 = vshrl.u32 %v330, 7
    %v332 = vsub.s32 %v329, %v331
    %v333 = vrot.slane %v319, %v332
    %v334 = vcombine.low %v301, %v317
    %v335 = vcombine.high %v301, %v317
    %v337 = vunpack.c.l.s4 1934713408
    %v338 = vunpack.c.0.s8 %v337
    %v339 = vlaneseq
    %v340 = vshrl.u32 %v339, 7
    %v341 = vsub.s32 %v338, %v340
    %v342 = vrot.slane %v334, %v341
    %v344 = vunpack.c.l.s4 1934713408
    %v345 = vunpack.c.0.s8 %v344
    %v346 = vlaneseq
    %v347 = vshrl.u32 %v346, 7
    %v348 = vsub.s32 %v345, %v347
    %v349 = vrot.slane %v335, %v348
    %v350 = vcombine.high %v326, 0.0
    %v351 = vcombine.high %v333, 0.0
    %v352 = vcombine.high %v342, 0.0
    %v353 = vcombine.high %v349, 0.0
    %v354 = vcombine.low %v174, %v277
    %v355 = vcombine.high %v174, %v277
    %v357 = vunpack.c.l.s4 1983009808
    %v358 = vunpack.c.0.s8 %v357
    %v359 = vlaneseq
    %v360 = vshrl.u32 %v359, 7
    %v361 = vsub.s32 %v358, %v360
    %v362 = vrot.slane %v354, %v361
    %v364 = vunpack.c.l.s4 1983009808
    %v365 = vunpack.c.0.s8 %v364
    %v366 = vlaneseq
    %v367 = vshrl.u32 %v366, 7
    %v368 = vsub.s32 %v365, %v367
    %v369 = vrot.slane %v355, %v368
    %v370 = vcombine.low %v271, %v283
    %v371 = vcombine.high %v271, %v283
    %v373 = vunpack.c.l.s4 1983009808
    %v374 = vunpack.c.0.s8 %v373
    %v375 = vlaneseq
    %v376 = vshrl.u32 %v375, 7
    %v377 = vsub.s32 %v374, %v376
    %v378 = vrot.slane %v370, %v377
    %v380 = vunpack.c.l.s4 1983009808
    %v381 = vunpack.c.0.s8 %v380
    %v382 = vlaneseq
    %v383 = vshrl.u32 %v382, 7
    %v384 = vsub.s32 %v381, %v383
    %v385 = vrot.slane %v371, %v384
    %v386 = vcombine.low %v362, %v378
    %v387 = vcombine.high %v362, %v378
    %v389 = vunpack.c.l.s4 1934713408
    %v390 = vunpack.c.0.s8 %v389
    %v391 = vlaneseq
    %v392 = vshrl.u32 %v391, 7
    %v393 = vsub.s32 %v390, %v392
    %v394 = vrot.slane %v386, %v393
    %v396 = vunpack.c.l.s4 1934713408
    %v397 = vunpack.c.0.s8 %v396
    %v398 = vlaneseq
    %v399 = vshrl.u32 %v398, 7
    %v400 = vsub.s32 %v397, %v399
    %v401 = vrot.slane %v387, %v400
    %v402 = vcombine.low %v369, %v385
    %v403 = vcombine.high %v369, %v385
    %v405 = vunpack.c.l.s4 1934713408
    %v406 = vunpack.c.0.s8 %v405
    %v407 = vlaneseq
    %v408 = vshrl.u32 %v407, 7
    %v409 = vsub.s32 %v406, %v408
    %v410 = vrot.slane %v402, %v409
    %v412 = vunpack.c.l.s4 1934713408
    %v413 = vunpack.c.0.s8 %v412
    %v414 = vlaneseq
    %v415 = vshrl.u32 %v414, 7
    %v416 = vsub.s32 %v413, %v415
    %v417 = vrot.slane %v403, %v416
    %v418 = vcombine.high %v394, 0.0
    %v419 = vcombine.high %v401, 0.0
    %v420 = vcombine.high %v410, 0.0
    %v421 = vcombine.high %v417, 0.0
    %v422 = vcombine.low %v326, %v333
    %v424 = vunpack.c.l.s4 1983009808
    %v425 = vunpack.c.0.s8 %v424
    %v426 = vlaneseq
    %v427 = vshrl.u32 %v426, 7
    %v428 = vsub.s32 %v425, %v427
    %v429 = vrot.slane %v422, %v428
    %v430 = vcombine.low %v350, %v351
    %v432 = vunpack.c.l.s4 1983009808
    %v433 = vunpack.c.0.s8 %v432
    %v434 = vlaneseq
    %v435 = vshrl.u32 %v434, 7
    %v436 = vsub.s32 %v433, %v435
    %v437 = vrot.slane %v430, %v436
    %v438 = vcombine.low %v342, %v349
    %v440 = vunpack.c.l.s4 1983009808
    %v441 = vunpack.c.0.s8 %v440
    %v442 = vlaneseq
    %v443 = vshrl.u32 %v442, 7
    %v444 = vsub.s32 %v441, %v443
    %v445 = vrot.slane %v438, %v444
    %v446 = vcombine.low %v352, %v353
    %v448 = vunpack.c.l.s4 1983009808
    %v449 = vunpack.c.0.s8 %v448
    %v450 = vlaneseq
    %v451 = vshrl.u32 %v450, 7
    %v452 = vsub.s32 %v449, %v451
    %v453 = vrot.slane %v446, %v452
    %v454 = vcombine.low %v429, %v437
    %v455 = vcombine.high %v429, %v437
    %v457 = vunpack.c.l.s4 1934713408
    %v458 = vunpack.c.0.s8 %v457
    %v459 = vlaneseq
    %v460 = vshrl.u32 %v459, 7
    %v461 = vsub.s32 %v458, %v460
    %v462 = vrot.slane %v454, %v461
    %v464 = vunpack.c.l.s4 1934713408
    %v465 = vunpack.c.0.s8 %v464
    %v466 = vlaneseq
    %v467 = vshrl.u32 %v466, 7
    %v468 = vsub.s32 %v465, %v467
    %v469 = vrot.slane %v455, %v468
    %v470 = vcombine.low %v445, %v453
    %v471 = vcombine.high %v445, %v453
    %v473 = vunpack.c.l.s4 1934713408
    %v474 = vunpack.c.0.s8 %v473
    %v475 = vlaneseq
    %v476 = vshrl.u32 %v475, 7
    %v477 = vsub.s32 %v474, %v476
    %v478 = vrot.slane %v470, %v477
    %v480 = vunpack.c.l.s4 1934713408
    %v481 = vunpack.c.0.s8 %v480
    %v482 = vlaneseq
    %v483 = vshrl.u32 %v482, 7
    %v484 = vsub.s32 %v481, %v483
    %v485 = vrot.slane %v471, %v484
    %v486 = vcombine.low %v462, %v478
    %v487 = vcombine.high %v462, %v478
    %v488 = vcombine.low %v469, %v485
    %v489 = vcombine.high %v469, %v485
    %v490 = vcombine.low %v394, %v401
    %v492 = vunpack.c.l.s4 1983009808
    %v493 = vunpack.c.0.s8 %v492
    %v494 = vlaneseq
    %v495 = vshrl.u32 %v494, 7
    %v496 = vsub.s32 %v493, %v495
    %v497 = vrot.slane %v490, %v496
    %v498 = vcombine.low %v418, %v419
    %v500 = vunpack.c.l.s4 1983009808
    %v501 = vunpack.c.0.s8 %v500
    %v502 = vlaneseq
    %v503 = vshrl.u32 %v502, 7
    %v504 = vsub.s32 %v501, %v503
    %v505 = vrot.slane %v498, %v504
    %v506 = vcombine.low %v410, %v417
    %v508 = vunpack.c.l.s4 1983009808
    %v509 = vunpack.c.0.s8 %v508
    %v510 = vlaneseq
    %v511 = vshrl.u32 %v510, 7
    %v512 = vsub.s32 %v509, %v511
    %v513 = vrot.slane %v506, %v512
    %v514 = vcombine.low %v420, %v421
    %v516 = vunpack.c.l.s4 1983009808
    %v517 = vunpack.c.0.s8 %v516
    %v518 = vlaneseq
    %v519 = vshrl.u32 %v518, 7
    %v520 = vsub.s32 %v517, %v519
    %v521 = vrot.slane %v514, %v520
    %v522 = vcombine.low %v497, %v505
    %v523 = vcombine.high %v497, %v505
    %v525 = vunpack.c.l.s4 1934713408
    %v526 = vunpack.c.0.s8 %v525
    %v527 = vlaneseq
    %v528 = vshrl.u32 %v527, 7
    %v529 = vsub.s32 %v526, %v528
    %v530 = vrot.slane %v522, %v529
    %v532 = vunpack.c.l.s4 1934713408
    %v533 = vunpack.c.0.s8 %v532
    %v534 = vlaneseq
    %v535 = vshrl.u32 %v534, 7
    %v536 = vsub.s32 %v533, %v535
    %v537 = vrot.slane %v523, %v536
    %v538 = vcombine.low %v513, %v521
    %v539 = vcombine.high %v513, %v521
    %v541 = vunpack.c.l.s4 1934713408
    %v542 = vunpack.c.0.s8 %v541
    %v543 = vlaneseq
    %v544 = vshrl.u32 %v543, 7
    %v545 = vsub.s32 %v542, %v544
    %v546 = vrot.slane %v538, %v545
    %v548 = vunpack.c.l.s4 1934713408
    %v549 = vunpack.c.0.s8 %v548
    %v550 = vlaneseq
    %v551 = vshrl.u32 %v550, 7
    %v552 = vsub.s32 %v549, %v551
    %v553 = vrot.slane %v539, %v552
    %v554 = vcombine.low %v530, %v546
    %v555 = vcombine.high %v530, %v546
    %v556 = vcombine.low %v537, %v553
    %v557 = vcombine.high %v537, %v553
    %558 = vrot.lane.b32.xlu0 %v169, 96
    %v559 = vpop.permute.xlu0 %558
    %560 = vrot.lane.b32.xlu0 %v174, 96
    %v561 = vpop.permute.xlu0 %560
    %562 = vrot.lane.b32.xlu0 %v269, 96
    %v563 = vpop.permute.xlu0 %562
    %564 = vrot.lane.b32.xlu0 %v271, 96
    %v565 = vpop.permute.xlu0 %564
    %566 = vrot.lane.b32.xlu0 %v275, 96
    %v567 = vpop.permute.xlu0 %566
    %568 = vrot.lane.b32.xlu0 %v277, 96
    %v569 = vpop.permute.xlu0 %568
    %570 = vrot.lane.b32.xlu0 %v281, 96
    %v571 = vpop.permute.xlu0 %570
    %572 = vrot.lane.b32.xlu0 %v283, 96
    %v573 = vpop.permute.xlu0 %572
    %v582 = vcombine.low %v559, %v567
    %v583 = vcombine.high %v559, %v567
    %v585 = vunpack.c.l.s4 1983009808
    %v586 = vunpack.c.0.s8 %v585
    %v587 = vlaneseq
    %v588 = vshrl.u32 %v587, 7
    %v589 = vsub.s32 %v586, %v588
    %v590 = vrot.slane %v582, %v589
    %v592 = vunpack.c.l.s4 1983009808
    %v593 = vunpack.c.0.s8 %v592
    %v594 = vlaneseq
    %v595 = vshrl.u32 %v594, 7
    %v596 = vsub.s32 %v593, %v595
    %v597 = vrot.slane %v583, %v596
    %v598 = vcombine.low %v563, %v571
    %v599 = vcombine.high %v563, %v571
    %v601 = vunpack.c.l.s4 1983009808
    %v602 = vunpack.c.0.s8 %v601
    %v603 = vlaneseq
    %v604 = vshrl.u32 %v603, 7
    %v605 = vsub.s32 %v602, %v604
    %v606 = vrot.slane %v598, %v605
    %v608 = vunpack.c.l.s4 1983009808
    %v609 = vunpack.c.0.s8 %v608
    %v610 = vlaneseq
    %v611 = vshrl.u32 %v610, 7
    %v612 = vsub.s32 %v609, %v611
    %v613 = vrot.slane %v599, %v612
    %v614 = vcombine.low %v590, %v606
    %v615 = vcombine.high %v590, %v606
    %v617 = vunpack.c.l.s4 1934713408
    %v618 = vunpack.c.0.s8 %v617
    %v619 = vlaneseq
    %v620 = vshrl.u32 %v619, 7
    %v621 = vsub.s32 %v618, %v620
    %v622 = vrot.slane %v614, %v621
    %v624 = vunpack.c.l.s4 1934713408
    %v625 = vunpack.c.0.s8 %v624
    %v626 = vlaneseq
    %v627 = vshrl.u32 %v626, 7
    %v628 = vsub.s32 %v625, %v627
    %v629 = vrot.slane %v615, %v628
    %v630 = vcombine.low %v597, %v613
    %v631 = vcombine.high %v597, %v613
    %v633 = vunpack.c.l.s4 1934713408
    %v634 = vunpack.c.0.s8 %v633
    %v635 = vlaneseq
    %v636 = vshrl.u32 %v635, 7
    %v637 = vsub.s32 %v634, %v636
    %v638 = vrot.slane %v630, %v637
    %v640 = vunpack.c.l.s4 1934713408
    %v641 = vunpack.c.0.s8 %v640
    %v642 = vlaneseq
    %v643 = vshrl.u32 %v642, 7
    %v644 = vsub.s32 %v641, %v643
    %v645 = vrot.slane %v631, %v644
    %v646 = vcombine.high %v622, 0.0
    %v647 = vcombine.high %v629, 0.0
    %v648 = vcombine.high %v638, 0.0
    %v649 = vcombine.high %v645, 0.0
    %v650 = vcombine.low %v561, %v569
    %v651 = vcombine.high %v561, %v569
    %v653 = vunpack.c.l.s4 1983009808
    %v654 = vunpack.c.0.s8 %v653
    %v655 = vlaneseq
    %v656 = vshrl.u32 %v655, 7
    %v657 = vsub.s32 %v654, %v656
    %v658 = vrot.slane %v650, %v657
    %v660 = vunpack.c.l.s4 1983009808
    %v661 = vunpack.c.0.s8 %v660
    %v662 = vlaneseq
    %v663 = vshrl.u32 %v662, 7
    %v664 = vsub.s32 %v661, %v663
    %v665 = vrot.slane %v651, %v664
    %v666 = vcombine.low %v565, %v573
    %v667 = vcombine.high %v565, %v573
    %v669 = vunpack.c.l.s4 1983009808
    %v670 = vunpack.c.0.s8 %v669
    %v671 = vlaneseq
    %v672 = vshrl.u32 %v671, 7
    %v673 = vsub.s32 %v670, %v672
    %v674 = vrot.slane %v666, %v673
    %v676 = vunpack.c.l.s4 1983009808
    %v677 = vunpack.c.0.s8 %v676
    %v678 = vlaneseq
    %v679 = vshrl.u32 %v678, 7
    %v680 = vsub.s32 %v677, %v679
    %v681 = vrot.slane %v667, %v680
    %v682 = vcombine.low %v658, %v674
    %v683 = vcombine.high %v658, %v674
    %v685 = vunpack.c.l.s4 1934713408
    %v686 = vunpack.c.0.s8 %v685
    %v687 = vlaneseq
    %v688 = vshrl.u32 %v687, 7
    %v689 = vsub.s32 %v686, %v688
    %v690 = vrot.slane %v682, %v689
    %v692 = vunpack.c.l.s4 1934713408
    %v693 = vunpack.c.0.s8 %v692
    %v694 = vlaneseq
    %v695 = vshrl.u32 %v694, 7
    %v696 = vsub.s32 %v693, %v695
    %v697 = vrot.slane %v683, %v696
    %v698 = vcombine.low %v665, %v681
    %v699 = vcombine.high %v665, %v681
    %v701 = vunpack.c.l.s4 1934713408
    %v702 = vunpack.c.0.s8 %v701
    %v703 = vlaneseq
    %v704 = vshrl.u32 %v703, 7
    %v705 = vsub.s32 %v702, %v704
    %v706 = vrot.slane %v698, %v705
    %v708 = vunpack.c.l.s4 1934713408
    %v709 = vunpack.c.0.s8 %v708
    %v710 = vlaneseq
    %v711 = vshrl.u32 %v710, 7
    %v712 = vsub.s32 %v709, %v711
    %v713 = vrot.slane %v699, %v712
    %v714 = vcombine.high %v690, 0.0
    %v715 = vcombine.high %v697, 0.0
    %v716 = vcombine.high %v706, 0.0
    %v717 = vcombine.high %v713, 0.0
    %v718 = vcombine.low %v622, %v629
    %v720 = vunpack.c.l.s4 1983009808
    %v721 = vunpack.c.0.s8 %v720
    %v722 = vlaneseq
    %v723 = vshrl.u32 %v722, 7
    %v724 = vsub.s32 %v721, %v723
    %v725 = vrot.slane %v718, %v724
    %v726 = vcombine.low %v646, %v647
    %v728 = vunpack.c.l.s4 1983009808
    %v729 = vunpack.c.0.s8 %v728
    %v730 = vlaneseq
    %v731 = vshrl.u32 %v730, 7
    %v732 = vsub.s32 %v729, %v731
    %v733 = vrot.slane %v726, %v732
    %v734 = vcombine.low %v638, %v645
    %v736 = vunpack.c.l.s4 1983009808
    %v737 = vunpack.c.0.s8 %v736
    %v738 = vlaneseq
    %v739 = vshrl.u32 %v738, 7
    %v740 = vsub.s32 %v737, %v739
    %v741 = vrot.slane %v734, %v740
    %v742 = vcombine.low %v648, %v649
    %v744 = vunpack.c.l.s4 1983009808
    %v745 = vunpack.c.0.s8 %v744
    %v746 = vlaneseq
    %v747 = vshrl.u32 %v746, 7
    %v748 = vsub.s32 %v745, %v747
    %v749 = vrot.slane %v742, %v748
    %v750 = vcombine.low %v725, %v733
    %v751 = vcombine.high %v725, %v733
    %v753 = vunpack.c.l.s4 1934713408
    %v754 = vunpack.c.0.s8 %v753
    %v755 = vlaneseq
    %v756 = vshrl.u32 %v755, 7
    %v757 = vsub.s32 %v754, %v756
    %v758 = vrot.slane %v750, %v757
    %v760 = vunpack.c.l.s4 1934713408
    %v761 = vunpack.c.0.s8 %v760
    %v762 = vlaneseq
    %v763 = vshrl.u32 %v762, 7
    %v764 = vsub.s32 %v761, %v763
    %v765 = vrot.slane %v751, %v764
    %v766 = vcombine.low %v741, %v749
    %v767 = vcombine.high %v741, %v749
    %v769 = vunpack.c.l.s4 1934713408
    %v770 = vunpack.c.0.s8 %v769
    %v771 = vlaneseq
    %v772 = vshrl.u32 %v771, 7
    %v773 = vsub.s32 %v770, %v772
    %v774 = vrot.slane %v766, %v773
    %v776 = vunpack.c.l.s4 1934713408
    %v777 = vunpack.c.0.s8 %v776
    %v778 = vlaneseq
    %v779 = vshrl.u32 %v778, 7
    %v780 = vsub.s32 %v777, %v779
    %v781 = vrot.slane %v767, %v780
    %v782 = vcombine.low %v758, %v774
    %v783 = vcombine.high %v758, %v774
    %v784 = vcombine.low %v765, %v781
    %v785 = vcombine.high %v765, %v781
    %v786 = vcombine.low %v690, %v697
    %v788 = vunpack.c.l.s4 1983009808
    %v789 = vunpack.c.0.s8 %v788
    %v790 = vlaneseq
    %v791 = vshrl.u32 %v790, 7
    %v792 = vsub.s32 %v789, %v791
    %v793 = vrot.slane %v786, %v792
    %v794 = vcombine.low %v714, %v715
    %v796 = vunpack.c.l.s4 1983009808
    %v797 = vunpack.c.0.s8 %v796
    %v798 = vlaneseq
    %v799 = vshrl.u32 %v798, 7
    %v800 = vsub.s32 %v797, %v799
    %v801 = vrot.slane %v794, %v800
    %v802 = vcombine.low %v706, %v713
    %v804 = vunpack.c.l.s4 1983009808
    %v805 = vunpack.c.0.s8 %v804
    %v806 = vlaneseq
    %v807 = vshrl.u32 %v806, 7
    %v808 = vsub.s32 %v805, %v807
    %v809 = vrot.slane %v802, %v808
    %v810 = vcombine.low %v716, %v717
    %v812 = vunpack.c.l.s4 1983009808
    %v813 = vunpack.c.0.s8 %v812
    %v814 = vlaneseq
    %v815 = vshrl.u32 %v814, 7
    %v816 = vsub.s32 %v813, %v815
    %v817 = vrot.slane %v810, %v816
    %v818 = vcombine.low %v793, %v801
    %v819 = vcombine.high %v793, %v801
    %v821 = vunpack.c.l.s4 1934713408
    %v822 = vunpack.c.0.s8 %v821
    %v823 = vlaneseq
    %v824 = vshrl.u32 %v823, 7
    %v825 = vsub.s32 %v822, %v824
    %v826 = vrot.slane %v818, %v825
    %v828 = vunpack.c.l.s4 1934713408
    %v829 = vunpack.c.0.s8 %v828
    %v830 = vlaneseq
    %v831 = vshrl.u32 %v830, 7
    %v832 = vsub.s32 %v829, %v831
    %v833 = vrot.slane %v819, %v832
    %v834 = vcombine.low %v809, %v817
    %v835 = vcombine.high %v809, %v817
    %v837 = vunpack.c.l.s4 1934713408
    %v838 = vunpack.c.0.s8 %v837
    %v839 = vlaneseq
    %v840 = vshrl.u32 %v839, 7
    %v841 = vsub.s32 %v838, %v840
    %v842 = vrot.slane %v834, %v841
    %v844 = vunpack.c.l.s4 1934713408
    %v845 = vunpack.c.0.s8 %v844
    %v846 = vlaneseq
    %v847 = vshrl.u32 %v846, 7
    %v848 = vsub.s32 %v845, %v847
    %v849 = vrot.slane %v835, %v848
    %v850 = vcombine.low %v826, %v842
    %v851 = vcombine.high %v826, %v842
    %v852 = vcombine.low %v833, %v849
    %v853 = vcombine.high %v833, %v849
    %856 = vrot.lane.b32.xlu0 %v258, 120
    %v857 = vpop.permute.xlu0 %856
    %858 = vrot.lane.b32.xlu0 %v263, 120
    %v859 = vpop.permute.xlu0 %858
    %862 = vrot.lane.b32.xlu0 %v258, 112
    %v863 = vpop.permute.xlu0 %862
    %864 = vrot.lane.b32.xlu0 %v263, 112
    %v865 = vpop.permute.xlu0 %864
    %868 = vrot.lane.b32.xlu0 %v258, 104
    %v869 = vpop.permute.xlu0 %868
    %870 = vrot.lane.b32.xlu0 %v263, 104
    %v871 = vpop.permute.xlu0 %870
    %v874 = vcombine.low %v258, %v863
    %v875 = vcombine.high %v258, %v863
    %v877 = vunpack.c.l.s4 1983009808
    %v878 = vunpack.c.0.s8 %v877
    %v879 = vlaneseq
    %v880 = vshrl.u32 %v879, 7
    %v881 = vsub.s32 %v878, %v880
    %v882 = vrot.slane %v874, %v881
    %v884 = vunpack.c.l.s4 1983009808
    %v885 = vunpack.c.0.s8 %v884
    %v886 = vlaneseq
    %v887 = vshrl.u32 %v886, 7
    %v888 = vsub.s32 %v885, %v887
    %v889 = vrot.slane %v875, %v888
    %v890 = vcombine.low %v857, %v869
    %v891 = vcombine.high %v857, %v869
    %v893 = vunpack.c.l.s4 1983009808
    %v894 = vunpack.c.0.s8 %v893
    %v895 = vlaneseq
    %v896 = vshrl.u32 %v895, 7
    %v897 = vsub.s32 %v894, %v896
    %v898 = vrot.slane %v890, %v897
    %v900 = vunpack.c.l.s4 1983009808
    %v901 = vunpack.c.0.s8 %v900
    %v902 = vlaneseq
    %v903 = vshrl.u32 %v902, 7
    %v904 = vsub.s32 %v901, %v903
    %v905 = vrot.slane %v891, %v904
    %v906 = vcombine.low %v882, %v898
    %v907 = vcombine.high %v882, %v898
    %v909 = vunpack.c.l.s4 1934713408
    %v910 = vunpack.c.0.s8 %v909
    %v911 = vlaneseq
    %v912 = vshrl.u32 %v911, 7
    %v913 = vsub.s32 %v910, %v912
    %v914 = vrot.slane %v906, %v913
    %v916 = vunpack.c.l.s4 1934713408
    %v917 = vunpack.c.0.s8 %v916
    %v918 = vlaneseq
    %v919 = vshrl.u32 %v918, 7
    %v920 = vsub.s32 %v917, %v919
    %v921 = vrot.slane %v907, %v920
    %v922 = vcombine.low %v889, %v905
    %v923 = vcombine.high %v889, %v905
    %v925 = vunpack.c.l.s4 1934713408
    %v926 = vunpack.c.0.s8 %v925
    %v927 = vlaneseq
    %v928 = vshrl.u32 %v927, 7
    %v929 = vsub.s32 %v926, %v928
    %v930 = vrot.slane %v922, %v929
    %v932 = vunpack.c.l.s4 1934713408
    %v933 = vunpack.c.0.s8 %v932
    %v934 = vlaneseq
    %v935 = vshrl.u32 %v934, 7
    %v936 = vsub.s32 %v933, %v935
    %v937 = vrot.slane %v923, %v936
    %v938 = vcombine.high %v914, 0.0
    %v939 = vcombine.high %v921, 0.0
    %v940 = vcombine.high %v930, 0.0
    %v941 = vcombine.high %v937, 0.0
    %v942 = vcombine.low %v263, %v865
    %v943 = vcombine.high %v263, %v865
    %v945 = vunpack.c.l.s4 1983009808
    %v946 = vunpack.c.0.s8 %v945
    %v947 = vlaneseq
    %v948 = vshrl.u32 %v947, 7
    %v949 = vsub.s32 %v946, %v948
    %v950 = vrot.slane %v942, %v949
    %v952 = vunpack.c.l.s4 1983009808
    %v953 = vunpack.c.0.s8 %v952
    %v954 = vlaneseq
    %v955 = vshrl.u32 %v954, 7
    %v956 = vsub.s32 %v953, %v955
    %v957 = vrot.slane %v943, %v956
    %v958 = vcombine.low %v859, %v871
    %v959 = vcombine.high %v859, %v871
    %v961 = vunpack.c.l.s4 1983009808
    %v962 = vunpack.c.0.s8 %v961
    %v963 = vlaneseq
    %v964 = vshrl.u32 %v963, 7
    %v965 = vsub.s32 %v962, %v964
    %v966 = vrot.slane %v958, %v965
    %v968 = vunpack.c.l.s4 1983009808
    %v969 = vunpack.c.0.s8 %v968
    %v970 = vlaneseq
    %v971 = vshrl.u32 %v970, 7
    %v972 = vsub.s32 %v969, %v971
    %v973 = vrot.slane %v959, %v972
    %v974 = vcombine.low %v950, %v966
    %v975 = vcombine.high %v950, %v966
    %v977 = vunpack.c.l.s4 1934713408
    %v978 = vunpack.c.0.s8 %v977
    %v979 = vlaneseq
    %v980 = vshrl.u32 %v979, 7
    %v981 = vsub.s32 %v978, %v980
    %v982 = vrot.slane %v974, %v981
    %v984 = vunpack.c.l.s4 1934713408
    %v985 = vunpack.c.0.s8 %v984
    %v986 = vlaneseq
    %v987 = vshrl.u32 %v986, 7
    %v988 = vsub.s32 %v985, %v987
    %v989 = vrot.slane %v975, %v988
    %v990 = vcombine.low %v957, %v973
    %v991 = vcombine.high %v957, %v973
    %v993 = vunpack.c.l.s4 1934713408
    %v994 = vunpack.c.0.s8 %v993
    %v995 = vlaneseq
    %v996 = vshrl.u32 %v995, 7
    %v997 = vsub.s32 %v994, %v996
    %v998 = vrot.slane %v990, %v997
    %v1000 = vunpack.c.l.s4 1934713408
    %v1001 = vunpack.c.0.s8 %v1000
    %v1002 = vlaneseq
    %v1003 = vshrl.u32 %v1002, 7
    %v1004 = vsub.s32 %v1001, %v1003
    %v1005 = vrot.slane %v991, %v1004
    %v1006 = vcombine.high %v982, 0.0
    %v1007 = vcombine.high %v989, 0.0
    %v1008 = vcombine.high %v998, 0.0
    %v1009 = vcombine.high %v1005, 0.0
    %v1010 = vcombine.low %v914, %v921
    %v1012 = vunpack.c.l.s4 1983009808
    %v1013 = vunpack.c.0.s8 %v1012
    %v1014 = vlaneseq
    %v1015 = vshrl.u32 %v1014, 7
    %v1016 = vsub.s32 %v1013, %v1015
    %v1017 = vrot.slane %v1010, %v1016
    %v1018 = vcombine.low %v938, %v939
    %v1020 = vunpack.c.l.s4 1983009808
    %v1021 = vunpack.c.0.s8 %v1020
    %v1022 = vlaneseq
    %v1023 = vshrl.u32 %v1022, 7
    %v1024 = vsub.s32 %v1021, %v1023
    %v1025 = vrot.slane %v1018, %v1024
    %v1026 = vcombine.low %v930, %v937
    %v1028 = vunpack.c.l.s4 1983009808
    %v1029 = vunpack.c.0.s8 %v1028
    %v1030 = vlaneseq
    %v1031 = vshrl.u32 %v1030, 7
    %v1032 = vsub.s32 %v1029, %v1031
    %v1033 = vrot.slane %v1026, %v1032
    %v1034 = vcombine.low %v940, %v941
    %v1036 = vunpack.c.l.s4 1983009808
    %v1037 = vunpack.c.0.s8 %v1036
    %v1038 = vlaneseq
    %v1039 = vshrl.u32 %v1038, 7
    %v1040 = vsub.s32 %v1037, %v1039
    %v1041 = vrot.slane %v1034, %v1040
    %v1042 = vcombine.low %v1017, %v1025
    %v1043 = vcombine.high %v1017, %v1025
    %v1045 = vunpack.c.l.s4 1934713408
    %v1046 = vunpack.c.0.s8 %v1045
    %v1047 = vlaneseq
    %v1048 = vshrl.u32 %v1047, 7
    %v1049 = vsub.s32 %v1046, %v1048
    %v1050 = vrot.slane %v1042, %v1049
    %v1052 = vunpack.c.l.s4 1934713408
    %v1053 = vunpack.c.0.s8 %v1052
    %v1054 = vlaneseq
    %v1055 = vshrl.u32 %v1054, 7
    %v1056 = vsub.s32 %v1053, %v1055
    %v1057 = vrot.slane %v1043, %v1056
    %v1058 = vcombine.low %v1033, %v1041
    %v1059 = vcombine.high %v1033, %v1041
    %v1061 = vunpack.c.l.s4 1934713408
    %v1062 = vunpack.c.0.s8 %v1061
    %v1063 = vlaneseq
    %v1064 = vshrl.u32 %v1063, 7
    %v1065 = vsub.s32 %v1062, %v1064
    %v1066 = vrot.slane %v1058, %v1065
    %v1068 = vunpack.c.l.s4 1934713408
    %v1069 = vunpack.c.0.s8 %v1068
    %v1070 = vlaneseq
    %v1071 = vshrl.u32 %v1070, 7
    %v1072 = vsub.s32 %v1069, %v1071
    %v1073 = vrot.slane %v1059, %v1072
    %v1074 = vcombine.low %v1050, %v1066
    %v1075 = vcombine.high %v1050, %v1066
    %v1076 = vcombine.low %v1057, %v1073
    %v1077 = vcombine.high %v1057, %v1073
    %v1078 = vcombine.low %v982, %v989
    %v1080 = vunpack.c.l.s4 1983009808
    %v1081 = vunpack.c.0.s8 %v1080
    %v1082 = vlaneseq
    %v1083 = vshrl.u32 %v1082, 7
    %v1084 = vsub.s32 %v1081, %v1083
    %v1085 = vrot.slane %v1078, %v1084
    %v1086 = vcombine.low %v1006, %v1007
    %v1088 = vunpack.c.l.s4 1983009808
    %v1089 = vunpack.c.0.s8 %v1088
    %v1090 = vlaneseq
    %v1091 = vshrl.u32 %v1090, 7
    %v1092 = vsub.s32 %v1089, %v1091
    %v1093 = vrot.slane %v1086, %v1092
    %v1094 = vcombine.low %v998, %v1005
    %v1096 = vunpack.c.l.s4 1983009808
    %v1097 = vunpack.c.0.s8 %v1096
    %v1098 = vlaneseq
    %v1099 = vshrl.u32 %v1098, 7
    %v1100 = vsub.s32 %v1097, %v1099
    %v1101 = vrot.slane %v1094, %v1100
    %v1102 = vcombine.low %v1008, %v1009
    %v1104 = vunpack.c.l.s4 1983009808
    %v1105 = vunpack.c.0.s8 %v1104
    %v1106 = vlaneseq
    %v1107 = vshrl.u32 %v1106, 7
    %v1108 = vsub.s32 %v1105, %v1107
    %v1109 = vrot.slane %v1102, %v1108
    %v1110 = vcombine.low %v1085, %v1093
    %v1111 = vcombine.high %v1085, %v1093
    %v1113 = vunpack.c.l.s4 1934713408
    %v1114 = vunpack.c.0.s8 %v1113
    %v1115 = vlaneseq
    %v1116 = vshrl.u32 %v1115, 7
    %v1117 = vsub.s32 %v1114, %v1116
    %v1118 = vrot.slane %v1110, %v1117
    %v1120 = vunpack.c.l.s4 1934713408
    %v1121 = vunpack.c.0.s8 %v1120
    %v1122 = vlaneseq
    %v1123 = vshrl.u32 %v1122, 7
    %v1124 = vsub.s32 %v1121, %v1123
    %v1125 = vrot.slane %v1111, %v1124
    %v1126 = vcombine.low %v1101, %v1109
    %v1127 = vcombine.high %v1101, %v1109
    %v1129 = vunpack.c.l.s4 1934713408
    %v1130 = vunpack.c.0.s8 %v1129
    %v1131 = vlaneseq
    %v1132 = vshrl.u32 %v1131, 7
    %v1133 = vsub.s32 %v1130, %v1132
    %v1134 = vrot.slane %v1126, %v1133
    %v1136 = vunpack.c.l.s4 1934713408
    %v1137 = vunpack.c.0.s8 %v1136
    %v1138 = vlaneseq
    %v1139 = vshrl.u32 %v1138, 7
    %v1140 = vsub.s32 %v1137, %v1139
    %v1141 = vrot.slane %v1127, %v1140
    %v1142 = vcombine.low %v1118, %v1134
    %v1143 = vcombine.high %v1118, %v1134
    %v1144 = vcombine.low %v1125, %v1141
    %v1145 = vcombine.high %v1125, %v1141
    %vm1146 = vcmask 64512
    %v1148 = vsel %vm1146, %v486, 0
    %v1151 = vsel %vm1146, %v554, 0
    %v1154 = vsel %vm1146, %v782, 0
    %v1157 = vsel %vm1146, %v850, 0
    %1159 = vmatprep.subr.mxu0 0.0
    %1160 = vmatpush1.xpose.msra.mxu0 %v1154
    %1161 = vmatprep.subr.mxu0 0.0
    %1162 = vmatpush1.xpose.msra.mxu0 %v1157
    %1163 = vmatprep.subr.mxu0 0.0
    %1164 = vmatpush1.xpose.msra.mxu0 0.0
    %1165 = vmatprep.subr.mxu0 0.0
    %1166 = vmatpush1.xpose.msra.mxu0 0.0
    %1167 = vmatprep.subr.mxu0 0.0
    %1168 = vmatpush1.xpose.msra.mxu0 0.0
    %1169 = vmatprep.subr.mxu0 0.0
    %1170 = vmatpush1.xpose.msra.mxu0 0.0
    %1171 = vmatprep.subr.mxu0 0.0
    %1172 = vmatpush1.xpose.msra.mxu0 0.0
    %1173 = vmatprep.subr.mxu0 0.0
    %1174 = vmatpush1.xpose.msra.mxu0 0.0
    %1175 = vmatprep.subr.mxu0 0.0
    %1176 = vmatpush1.xpose.msra.mxu0 0.0
    %1177 = vmatprep.subr.mxu0 0.0
    %1178 = vmatpush1.xpose.msra.mxu0 0.0
    %1179 = vmatprep.subr.mxu0 0.0
    %1180 = vmatpush1.xpose.msra.mxu0 0.0
    %1181 = vmatprep.subr.mxu0 0.0
    %1182 = vmatpush1.xpose.msra.mxu0 0.0
    %1183 = vmatprep.subr.mxu0 0.0
    %1184 = vmatpush1.xpose.msra.mxu0 0.0
    %1185 = vmatprep.subr.mxu0 0.0
    %1186 = vmatpush1.xpose.msra.mxu0 0.0
    %1187 = vmatprep.subr.mxu0 0.0
    %1188 = vmatpush1.xpose.msra.mxu0 0.0
    %1189 = vmatprep.subr.mxu0 0.0
    %1190 = vmatpush1.xpose.msra.mxu0 0.0
    %1191 = vmatprep.subr.mxu0 0.0
    %1192 = vmatpush1.xpose.msra.mxu0 0.0
    %1193 = vmatprep.subr.mxu0 0.0
    %1194 = vmatpush1.xpose.msra.mxu0 0.0
    %1195 = vmatprep.subr.mxu0 0.0
    %1196 = vmatpush1.xpose.msra.mxu0 0.0
    %1197 = vmatprep.subr.mxu0 0.0
    %1198 = vmatpush1.xpose.msra.mxu0 0.0
    %1199 = vmatprep.subr.mxu0 0.0
    %1200 = vmatpush1.xpose.msra.mxu0 0.0
    %1201 = vmatprep.subr.mxu0 0.0
    %1202 = vmatpush1.xpose.msra.mxu0 0.0
    %1203 = vmatprep.subr.mxu0 0.0
    %1204 = vmatpush1.xpose.msra.mxu0 0.0
    %1205 = vmatprep.subr.mxu0 0.0
    %1206 = vmatpush1.xpose.msra.mxu0 0.0
    %1207 = vmatprep.subr.mxu0 0.0
    %1208 = vmatpush1.xpose.msra.mxu0 0.0
    %1209 = vmatprep.subr.mxu0 0.0
    %1210 = vmatpush1.xpose.msra.mxu0 0.0
    %1211 = vmatprep.subr.mxu0 0.0
    %1212 = vmatpush1.xpose.msra.mxu0 0.0
    %1213 = vmatprep.subr.mxu0 0.0
    %1214 = vmatpush1.xpose.msra.mxu0 0.0
    %1215 = vmatprep.subr.mxu0 0.0
    %1216 = vmatpush1.xpose.msra.mxu0 0.0
    %1217 = vmatprep.subr.mxu0 0.0
    %1218 = vmatpush1.xpose.msra.mxu0 0.0
    %1219 = vmatprep.subr.mxu0 0.0
    %1220 = vmatpush1.xpose.msra.mxu0 0.0
    %1221 = vmatprep.subr.mxu0 0.0
    %1222 = vmatpush1.xpose.msra.mxu0 0.0
    %1223 = vmatprep.mubr.f32.mxu0 0.0
    %1224 = vmatmul.mubr.f32.gmra.mrb[0].mxu0 %v1148
    %v1225 = vpop.f32.mrb[0].mxu0
    %v1226 = vadd.f32 0.0, %v1225
    %v1227 = vpop.f32.mrb[0].mxu0
    %1228 = vmatprep.mubr.f32.mxu0 0.0
    %1229 = vmatmul.mubr.f32.gmra.mrb[0].mxu0 %v1151
    %v1230 = vpop.f32.mrb[0].mxu0
    %v1231 = vadd.f32 0.0, %v1230
    %v1232 = vpop.f32.mrb[0].mxu0
    %1233 = vdwg.mxu0
    %v1235 = vsel %vm1146, %v487, 0
    %v1238 = vsel %vm1146, %v555, 0
    %v1241 = vsel %vm1146, %v783, 0
    %v1244 = vsel %vm1146, %v851, 0
    %1246 = vmatprep.subr.mxu0 0.0
    %1247 = vmatpush1.xpose.msra.mxu0 %v1241
    %1248 = vmatprep.subr.mxu0 0.0
    %1249 = vmatpush1.xpose.msra.mxu0 %v1244
    %1250 = vmatprep.subr.mxu0 0.0
    %1251 = vmatpush1.xpose.msra.mxu0 0.0
    %1252 = vmatprep.subr.mxu0 0.0
    %1253 = vmatpush1.xpose.msra.mxu0 0.0
    %1254 = vmatprep.subr.mxu0 0.0
    %1255 = vmatpush1.xpose.msra.mxu0 0.0
    %1256 = vmatprep.subr.mxu0 0.0
    %1257 = vmatpush1.xpose.msra.mxu0 0.0
    %1258 = vmatprep.subr.mxu0 0.0
    %1259 = vmatpush1.xpose.msra.mxu0 0.0
    %1260 = vmatprep.subr.mxu0 0.0
    %1261 = vmatpush1.xpose.msra.mxu0 0.0
    %1262 = vmatprep.subr.mxu0 0.0
    %1263 = vmatpush1.xpose.msra.mxu0 0.0
    %1264 = vmatprep.subr.mxu0 0.0
    %1265 = vmatpush1.xpose.msra.mxu0 0.0
    %1266 = vmatprep.subr.mxu0 0.0
    %1267 = vmatpush1.xpose.msra.mxu0 0.0
    %1268 = vmatprep.subr.mxu0 0.0
    %1269 = vmatpush1.xpose.msra.mxu0 0.0
    %1270 = vmatprep.subr.mxu0 0.0
    %1271 = vmatpush1.xpose.msra.mxu0 0.0
    %1272 = vmatprep.subr.mxu0 0.0
    %1273 = vmatpush1.xpose.msra.mxu0 0.0
    %1274 = vmatprep.subr.mxu0 0.0
    %1275 = vmatpush1.xpose.msra.mxu0 0.0
    %1276 = vmatprep.subr.mxu0 0.0
    %1277 = vmatpush1.xpose.msra.mxu0 0.0
    %1278 = vmatprep.subr.mxu0 0.0
    %1279 = vmatpush1.xpose.msra.mxu0 0.0
    %1280 = vmatprep.subr.mxu0 0.0
    %1281 = vmatpush1.xpose.msra.mxu0 0.0
    %1282 = vmatprep.subr.mxu0 0.0
    %1283 = vmatpush1.xpose.msra.mxu0 0.0
    %1284 = vmatprep.subr.mxu0 0.0
    %1285 = vmatpush1.xpose.msra.mxu0 0.0
    %1286 = vmatprep.subr.mxu0 0.0
    %1287 = vmatpush1.xpose.msra.mxu0 0.0
    %1288 = vmatprep.subr.mxu0 0.0
    %1289 = vmatpush1.xpose.msra.mxu0 0.0
    %1290 = vmatprep.subr.mxu0 0.0
    %1291 = vmatpush1.xpose.msra.mxu0 0.0
    %1292 = vmatprep.subr.mxu0 0.0
    %1293 = vmatpush1.xpose.msra.mxu0 0.0
    %1294 = vmatprep.subr.mxu0 0.0
    %1295 = vmatpush1.xpose.msra.mxu0 0.0
    %1296 = vmatprep.subr.mxu0 0.0
    %1297 = vmatpush1.xpose.msra.mxu0 0.0
    %1298 = vmatprep.subr.mxu0 0.0
    %1299 = vmatpush1.xpose.msra.mxu0 0.0
    %1300 = vmatprep.subr.mxu0 0.0
    %1301 = vmatpush1.xpose.msra.mxu0 0.0
    %1302 = vmatprep.subr.mxu0 0.0
    %1303 = vmatpush1.xpose.msra.mxu0 0.0
    %1304 = vmatprep.subr.mxu0 0.0
    %1305 = vmatpush1.xpose.msra.mxu0 0.0
    %1306 = vmatprep.subr.mxu0 0.0
    %1307 = vmatpush1.xpose.msra.mxu0 0.0
    %1308 = vmatprep.subr.mxu0 0.0
    %1309 = vmatpush1.xpose.msra.mxu0 0.0
    %1310 = vmatprep.mubr.f32.mxu0 0.0
    %1311 = vmatmul.mubr.f32.gmra.mrb[0].mxu0 %v1235
    %v1312 = vpop.f32.mrb[0].mxu0
    %v1313 = vadd.f32 0.0, %v1312
    %v1314 = vpop.f32.mrb[0].mxu0
    %1315 = vmatprep.mubr.f32.mxu0 0.0
    %1316 = vmatmul.mubr.f32.gmra.mrb[0].mxu0 %v1238
    %v1317 = vpop.f32.mrb[0].mxu0
    %v1318 = vadd.f32 0.0, %v1317
    %v1319 = vpop.f32.mrb[0].mxu0
    %1320 = vdwg.mxu0
    %v1322 = vsel %vm1146, %v488, 0
    %v1325 = vsel %vm1146, %v556, 0
    %v1328 = vsel %vm1146, %v784, 0
    %v1331 = vsel %vm1146, %v852, 0
    %1333 = vmatprep.subr.mxu0 0.0
    %1334 = vmatpush1.xpose.msra.mxu0 %v1328
    %1335 = vmatprep.subr.mxu0 0.0
    %1336 = vmatpush1.xpose.msra.mxu0 %v1331
    %1337 = vmatprep.subr.mxu0 0.0
    %1338 = vmatpush1.xpose.msra.mxu0 0.0
    %1339 = vmatprep.subr.mxu0 0.0
    %1340 = vmatpush1.xpose.msra.mxu0 0.0
    %1341 = vmatprep.subr.mxu0 0.0
    %1342 = vmatpush1.xpose.msra.mxu0 0.0
    %1343 = vmatprep.subr.mxu0 0.0
    %1344 = vmatpush1.xpose.msra.mxu0 0.0
    %1345 = vmatprep.subr.mxu0 0.0
    %1346 = vmatpush1.xpose.msra.mxu0 0.0
    %1347 = vmatprep.subr.mxu0 0.0
    %1348 = vmatpush1.xpose.msra.mxu0 0.0
    %1349 = vmatprep.subr.mxu0 0.0
    %1350 = vmatpush1.xpose.msra.mxu0 0.0
    %1351 = vmatprep.subr.mxu0 0.0
    %1352 = vmatpush1.xpose.msra.mxu0 0.0
    %1353 = vmatprep.subr.mxu0 0.0
    %1354 = vmatpush1.xpose.msra.mxu0 0.0
    %1355 = vmatprep.subr.mxu0 0.0
    %1356 = vmatpush1.xpose.msra.mxu0 0.0
    %1357 = vmatprep.subr.mxu0 0.0
    %1358 = vmatpush1.xpose.msra.mxu0 0.0
    %1359 = vmatprep.subr.mxu0 0.0
    %1360 = vmatpush1.xpose.msra.mxu0 0.0
    %1361 = vmatprep.subr.mxu0 0.0
    %1362 = vmatpush1.xpose.msra.mxu0 0.0
    %1363 = vmatprep.subr.mxu0 0.0
    %1364 = vmatpush1.xpose.msra.mxu0 0.0
    %1365 = vmatprep.subr.mxu0 0.0
    %1366 = vmatpush1.xpose.msra.mxu0 0.0
    %1367 = vmatprep.subr.mxu0 0.0
    %1368 = vmatpush1.xpose.msra.mxu0 0.0
    %1369 = vmatprep.subr.mxu0 0.0
    %1370 = vmatpush1.xpose.msra.mxu0 0.0
    %1371 = vmatprep.subr.mxu0 0.0
    %1372 = vmatpush1.xpose.msra.mxu0 0.0
    %1373 = vmatprep.subr.mxu0 0.0
    %1374 = vmatpush1.xpose.msra.mxu0 0.0
    %1375 = vmatprep.subr.mxu0 0.0
    %1376 = vmatpush1.xpose.msra.mxu0 0.0
    %1377 = vmatprep.subr.mxu0 0.0
    %1378 = vmatpush1.xpose.msra.mxu0 0.0
    %1379 = vmatprep.subr.mxu0 0.0
    %1380 = vmatpush1.xpose.msra.mxu0 0.0
    %1381 = vmatprep.subr.mxu0 0.0
    %1382 = vmatpush1.xpose.msra.mxu0 0.0
    %1383 = vmatprep.subr.mxu0 0.0
    %1384 = vmatpush1.xpose.msra.mxu0 0.0
    %1385 = vmatprep.subr.mxu0 0.0
    %1386 = vmatpush1.xpose.msra.mxu0 0.0
    %1387 = vmatprep.subr.mxu0 0.0
    %1388 = vmatpush1.xpose.msra.mxu0 0.0
    %1389 = vmatprep.subr.mxu0 0.0
    %1390 = vmatpush1.xpose.msra.mxu0 0.0
    %1391 = vmatprep.subr.mxu0 0.0
    %1392 = vmatpush1.xpose.msra.mxu0 0.0
    %1393 = vmatprep.subr.mxu0 0.0
    %1394 = vmatpush1.xpose.msra.mxu0 0.0
    %1395 = vmatprep.subr.mxu0 0.0
    %1396 = vmatpush1.xpose.msra.mxu0 0.0
    %1397 = vmatprep.mubr.f32.mxu0 0.0
    %1398 = vmatmul.mubr.f32.gmra.mrb[0].mxu0 %v1322
    %v1399 = vpop.f32.mrb[0].mxu0
    %v1400 = vadd.f32 0.0, %v1399
    %v1401 = vpop.f32.mrb[0].mxu0
    %1402 = vmatprep.mubr.f32.mxu0 0.0
    %1403 = vmatmul.mubr.f32.gmra.mrb[0].mxu0 %v1325
    %v1404 = vpop.f32.mrb[0].mxu0
    %v1405 = vadd.f32 0.0, %v1404
    %v1406 = vpop.f32.mrb[0].mxu0
    %1407 = vdwg.mxu0
    %v1409 = vsel %vm1146, %v489, 0
    %v1412 = vsel %vm1146, %v557, 0
    %v1415 = vsel %vm1146, %v785, 0
    %v1418 = vsel %vm1146, %v853, 0
    %1420 = vmatprep.subr.mxu0 0.0
    %1421 = vmatpush1.xpose.msra.mxu0 %v1415
    %1422 = vmatprep.subr.mxu0 0.0
    %1423 = vmatpush1.xpose.msra.mxu0 %v1418
    %1424 = vmatprep.subr.mxu0 0.0
    %1425 = vmatpush1.xpose.msra.mxu0 0.0
    %1426 = vmatprep.subr.mxu0 0.0
    %1427 = vmatpush1.xpose.msra.mxu0 0.0
    %1428 = vmatprep.subr.mxu0 0.0
    %1429 = vmatpush1.xpose.msra.mxu0 0.0
    %1430 = vmatprep.subr.mxu0 0.0
    %1431 = vmatpush1.xpose.msra.mxu0 0.0
    %1432 = vmatprep.subr.mxu0 0.0
    %1433 = vmatpush1.xpose.msra.mxu0 0.0
    %1434 = vmatprep.subr.mxu0 0.0
    %1435 = vmatpush1.xpose.msra.mxu0 0.0
    %1436 = vmatprep.subr.mxu0 0.0
    %1437 = vmatpush1.xpose.msra.mxu0 0.0
    %1438 = vmatprep.subr.mxu0 0.0
    %1439 = vmatpush1.xpose.msra.mxu0 0.0
    %1440 = vmatprep.subr.mxu0 0.0
    %1441 = vmatpush1.xpose.msra.mxu0 0.0
    %1442 = vmatprep.subr.mxu0 0.0
    %1443 = vmatpush1.xpose.msra.mxu0 0.0
    %1444 = vmatprep.subr.mxu0 0.0
    %1445 = vmatpush1.xpose.msra.mxu0 0.0
    %1446 = vmatprep.subr.mxu0 0.0
    %1447 = vmatpush1.xpose.msra.mxu0 0.0
    %1448 = vmatprep.subr.mxu0 0.0
    %1449 = vmatpush1.xpose.msra.mxu0 0.0
    %1450 = vmatprep.subr.mxu0 0.0
    %1451 = vmatpush1.xpose.msra.mxu0 0.0
    %1452 = vmatprep.subr.mxu0 0.0
    %1453 = vmatpush1.xpose.msra.mxu0 0.0
    %1454 = vmatprep.subr.mxu0 0.0
    %1455 = vmatpush1.xpose.msra.mxu0 0.0
    %1456 = vmatprep.subr.mxu0 0.0
    %1457 = vmatpush1.xpose.msra.mxu0 0.0
    %1458 = vmatprep.subr.mxu0 0.0
    %1459 = vmatpush1.xpose.msra.mxu0 0.0
    %1460 = vmatprep.subr.mxu0 0.0
    %1461 = vmatpush1.xpose.msra.mxu0 0.0
    %1462 = vmatprep.subr.mxu0 0.0
    %1463 = vmatpush1.xpose.msra.mxu0 0.0
    %1464 = vmatprep.subr.mxu0 0.0
    %1465 = vmatpush1.xpose.msra.mxu0 0.0
    %1466 = vmatprep.subr.mxu0 0.0
    %1467 = vmatpush1.xpose.msra.mxu0 0.0
    %1468 = vmatprep.subr.mxu0 0.0
    %1469 = vmatpush1.xpose.msra.mxu0 0.0
    %1470 = vmatprep.subr.mxu0 0.0
    %1471 = vmatpush1.xpose.msra.mxu0 0.0
    %1472 = vmatprep.subr.mxu0 0.0
    %1473 = vmatpush1.xpose.msra.mxu0 0.0
    %1474 = vmatprep.subr.mxu0 0.0
    %1475 = vmatpush1.xpose.msra.mxu0 0.0
    %1476 = vmatprep.subr.mxu0 0.0
    %1477 = vmatpush1.xpose.msra.mxu0 0.0
    %1478 = vmatprep.subr.mxu0 0.0
    %1479 = vmatpush1.xpose.msra.mxu0 0.0
    %1480 = vmatprep.subr.mxu0 0.0
    %1481 = vmatpush1.xpose.msra.mxu0 0.0
    %1482 = vmatprep.subr.mxu0 0.0
    %1483 = vmatpush1.xpose.msra.mxu0 0.0
    %1484 = vmatprep.mubr.f32.mxu0 0.0
    %1485 = vmatmul.mubr.f32.gmra.mrb[0].mxu0 %v1409
    %v1486 = vpop.f32.mrb[0].mxu0
    %v1487 = vadd.f32 0.0, %v1486
    %v1488 = vpop.f32.mrb[0].mxu0
    %1489 = vmatprep.mubr.f32.mxu0 0.0
    %1490 = vmatmul.mubr.f32.gmra.mrb[0].mxu0 %v1412
    %v1491 = vpop.f32.mrb[0].mxu0
    %v1492 = vadd.f32 0.0, %v1491
    %v1493 = vpop.f32.mrb[0].mxu0
    %1494 = vdwg.mxu0
    %v1495 = vmul.f32 %v1226, 0.35355338
    %v1496 = vmul.f32 %v1231, 0.35355338
    %v1497 = vmul.f32 %v1313, 0.35355338
    %v1498 = vmul.f32 %v1318, 0.35355338
    %v1499 = vmul.f32 %v1400, 0.35355338
    %v1500 = vmul.f32 %v1405, 0.35355338
    %v1501 = vmul.f32 %v1487, 0.35355338
    %v1502 = vmul.f32 %v1492, 0.35355338
    %v1503 = vlaneseq
    %v1504 = vshrl.u32 %v1503, 7
    %v1505 = vadd.s32 %v1504, 8
    %v1506 = vlaneseq
    %v1507 = vand.u32 %v1506, 127
    %vm1508 = vcmp.lt.s32.totalorder %v1504, 0
    %v1509 = vsub.s32 0, %v1504
    %v1510 = vsel %vm1508, %v1509, %v1504
    %v1511 = vshrl.u32 %v1510, 1
    %v1512 = vand.u32 %v1510, 1
    %v1513 = vsub.s32 0, %v1512
    %v1514 = vsel %vm1508, %v1513, %v1512
    %vm1515 = vcmp.lt.s32.totalorder %v1505, 0
    %v1516 = vsub.s32 0, %v1505
    %v1517 = vsel %vm1515, %v1516, %v1505
    %v1518 = vshrl.u32 %v1517, 1
    %v1519 = vand.u32 %v1517, 1
    %v1520 = vsub.s32 0, %v1519
    %v1521 = vsel %vm1515, %v1520, %v1519
    %vm1522 = vcmp.ne.s32.totalorder %v1514, 0
    %vm1523 = vcmp.ne.s32.totalorder %v1521, 0
    %vm1524 = vcmp.lt.s32.totalorder %v1514, 0
    %vm1525 = vcmp.lt.s32.totalorder %v1521, 0
    %vm1526 = vmand %vm1524, %vm1522
    %vm1527 = vmand %vm1525, %vm1523
    %v1528 = vadd.s32 %v1514, 2
    %v1529 = vadd.s32 %v1521, 2
    %v1530 = vsel %vm1526, %v1528, %v1514
    %v1531 = vsel %vm1527, %v1529, %v1521
    %vm1532 = vcmp.lt.s32.totalorder %v1507, 0
    %v1533 = vsub.s32 0, %v1507
    %v1534 = vsel %vm1532, %v1533, %v1507
    %v1535 = vshrl.u32 %v1534, 1
    %v1536 = vand.u32 %v1534, 1
    %v1537 = vsub.s32 0, %v1536
    %v1538 = vsel %vm1532, %v1537, %v1536
    %vm1539 = vcmp.ne.s32.totalorder %v1538, 0
    %vm1540 = vcmp.lt.s32.totalorder %v1538, 0
    %vm1541 = vmand %vm1540, %vm1539
    %v1542 = vadd.s32 %v1538, 2
    %v1543 = vsel %vm1541, %v1542, %v1538
    %vm1544 = vcmp.eq.s32.totalorder %v1530, %v1543
    %vm1545 = vcmp.eq.s32.totalorder %v1531, %v1543
    %v1546 = vsel %vm1544, 1, 0
    %v1547 = vsel %vm1545, 1, 0
    %vm1548 = vcmp.eq.s32.totalorder %v1546, 1
    %vm1549 = vcmp.eq.s32.totalorder %v1547, 1
    %v1550 = vsel %vm1548, %v1495, -1e+30
    %v1551 = vsel %vm1549, %v1496, -1e+30
    %v1552 = vsel %vm1548, %v1497, -1e+30
    %v1553 = vsel %vm1549, %v1498, -1e+30
    %v1554 = vsel %vm1548, %v1499, -1e+30
    %v1555 = vsel %vm1549, %v1500, -1e+30
    %v1556 = vsel %vm1548, %v1501, -1e+30
    %v1557 = vsel %vm1549, %v1502, -1e+30
    %vm1558 = vcmask 130048
    %v1559 = vsel %vm1558, %v1550, -inf
    %1560 = vmax.xlane.f32.xlu0 %v1559
    %v1561 = vpop.xlane.xlu0 %1560
    %v1562 = vsel %vm1558, %v1551, -inf
    %1563 = vmax.xlane.f32.xlu0 %v1562
    %v1564 = vpop.xlane.xlu0 %1563
    %v1565 = vsel %vm1558, %v1552, -inf
    %1566 = vmax.xlane.f32.xlu0 %v1565
    %v1567 = vpop.xlane.xlu0 %1566
    %v1568 = vsel %vm1558, %v1553, -inf
    %1569 = vmax.xlane.f32.xlu0 %v1568
    %v1570 = vpop.xlane.xlu0 %1569
    %v1571 = vsel %vm1558, %v1554, -inf
    %1572 = vmax.xlane.f32.xlu0 %v1571
    %v1573 = vpop.xlane.xlu0 %1572
    %v1574 = vsel %vm1558, %v1555, -inf
    %1575 = vmax.xlane.f32.xlu0 %v1574
    %v1576 = vpop.xlane.xlu0 %1575
    %v1577 = vsel %vm1558, %v1556, -inf
    %1578 = vmax.xlane.f32.xlu0 %v1577
    %v1579 = vpop.xlane.xlu0 %1578
    %v1580 = vsel %vm1558, %v1557, -inf
    %1581 = vmax.xlane.f32.xlu0 %v1580
    %v1582 = vpop.xlane.xlu0 %1581
    %v1583 = vsub.f32 %v1550, %v1561
    %v1584 = vsub.f32 %v1551, %v1564
    %v1585 = vsub.f32 %v1552, %v1567
    %v1586 = vsub.f32 %v1553, %v1570
    %v1587 = vsub.f32 %v1554, %v1573
    %v1588 = vsub.f32 %v1555, %v1576
    %v1589 = vsub.f32 %v1556, %v1579
    %v1590 = vsub.f32 %v1557, %v1582
    %v1591 = vmul.f32 %v1583, 1.442695
    %v1592 = vpow.pop %v1591
    %v1593 = vmul.f32 %v1584, 1.442695
    %v1594 = vpow.pop %v1593
    %v1595 = vmul.f32 %v1585, 1.442695
    %v1596 = vpow.pop %v1595
    %v1597 = vmul.f32 %v1586, 1.442695
    %v1598 = vpow.pop %v1597
    %v1599 = vmul.f32 %v1587, 1.442695
    %v1600 = vpow.pop %v1599
    %v1601 = vmul.f32 %v1588, 1.442695
    %v1602 = vpow.pop %v1601
    %v1603 = vmul.f32 %v1589, 1.442695
    %v1604 = vpow.pop %v1603
    %v1605 = vmul.f32 %v1590, 1.442695
    %v1606 = vpow.pop %v1605
    %v1607 = vsel %vm1558, %v1592, 0.0
    %1608 = vadd.xlane.f32.xlu0 %v1607
    %v1609 = vpop.xlane.xlu0 %1608
    %v1610 = vsel %vm1558, %v1594, 0.0
    %1611 = vadd.xlane.f32.xlu0 %v1610
    %v1612 = vpop.xlane.xlu0 %1611
    %v1613 = vsel %vm1558, %v1596, 0.0
    %1614 = vadd.xlane.f32.xlu0 %v1613
    %v1615 = vpop.xlane.xlu0 %1614
    %v1616 = vsel %vm1558, %v1598, 0.0
    %1617 = vadd.xlane.f32.xlu0 %v1616
    %v1618 = vpop.xlane.xlu0 %1617
    %v1619 = vsel %vm1558, %v1600, 0.0
    %1620 = vadd.xlane.f32.xlu0 %v1619
    %v1621 = vpop.xlane.xlu0 %1620
    %v1622 = vsel %vm1558, %v1602, 0.0
    %1623 = vadd.xlane.f32.xlu0 %v1622
    %v1624 = vpop.xlane.xlu0 %1623
    %v1625 = vsel %vm1558, %v1604, 0.0
    %1626 = vadd.xlane.f32.xlu0 %v1625
    %v1627 = vpop.xlane.xlu0 %1626
    %v1628 = vsel %vm1558, %v1606, 0.0
    %1629 = vadd.xlane.f32.xlu0 %v1628
    %v1630 = vpop.xlane.xlu0 %1629
    %v1631 = vrcp.pop %v1609
    %v1632 = vrcp.pop %v1612
    %v1633 = vrcp.pop %v1615
    %v1634 = vrcp.pop %v1618
    %v1635 = vrcp.pop %v1621
    %v1636 = vrcp.pop %v1624
    %v1637 = vrcp.pop %v1627
    %v1638 = vrcp.pop %v1630
    %v1639 = vmul.f32 %v1592, %v1631
    %v1640 = vmul.f32 %v1594, %v1632
    %v1641 = vmul.f32 %v1596, %v1633
    %v1642 = vmul.f32 %v1598, %v1634
    %v1643 = vmul.f32 %v1600, %v1635
    %v1644 = vmul.f32 %v1602, %v1636
    %v1645 = vmul.f32 %v1604, %v1637
    %v1646 = vmul.f32 %v1606, %v1638
    %v1648 = vsel %vm1558, %v1639, 0
    %v1651 = vsel %vm1558, %v1640, 0
    %1653 = vmatprep.subr.mxu0 0.0
    %1654 = vmatpush1.msra.mxu0 %v1074
    %1655 = vmatprep.subr.mxu0 0.0
    %1656 = vmatpush1.msra.mxu0 %v1142
    %1657 = vmatprep.subr.mxu0 0.0
    %1658 = vmatpush1.msra.mxu0 0.0
    %1659 = vmatprep.subr.mxu0 0.0
    %1660 = vmatpush1.msra.mxu0 0.0
    %1661 = vmatprep.subr.mxu0 0.0
    %1662 = vmatpush1.msra.mxu0 0.0
    %1663 = vmatprep.subr.mxu0 0.0
    %1664 = vmatpush1.msra.mxu0 0.0
    %1665 = vmatprep.subr.mxu0 0.0
    %1666 = vmatpush1.msra.mxu0 0.0
    %1667 = vmatprep.subr.mxu0 0.0
    %1668 = vmatpush1.msra.mxu0 0.0
    %1669 = vmatprep.subr.mxu0 0.0
    %1670 = vmatpush1.msra.mxu0 0.0
    %1671 = vmatprep.subr.mxu0 0.0
    %1672 = vmatpush1.msra.mxu0 0.0
    %1673 = vmatprep.subr.mxu0 0.0
    %1674 = vmatpush1.msra.mxu0 0.0
    %1675 = vmatprep.subr.mxu0 0.0
    %1676 = vmatpush1.msra.mxu0 0.0
    %1677 = vmatprep.subr.mxu0 0.0
    %1678 = vmatpush1.msra.mxu0 0.0
    %1679 = vmatprep.subr.mxu0 0.0
    %1680 = vmatpush1.msra.mxu0 0.0
    %1681 = vmatprep.subr.mxu0 0.0
    %1682 = vmatpush1.msra.mxu0 0.0
    %1683 = vmatprep.subr.mxu0 0.0
    %1684 = vmatpush1.msra.mxu0 0.0
    %1685 = vmatprep.subr.mxu0 0.0
    %1686 = vmatpush1.msra.mxu0 0.0
    %1687 = vmatprep.subr.mxu0 0.0
    %1688 = vmatpush1.msra.mxu0 0.0
    %1689 = vmatprep.subr.mxu0 0.0
    %1690 = vmatpush1.msra.mxu0 0.0
    %1691 = vmatprep.subr.mxu0 0.0
    %1692 = vmatpush1.msra.mxu0 0.0
    %1693 = vmatprep.subr.mxu0 0.0
    %1694 = vmatpush1.msra.mxu0 0.0
    %1695 = vmatprep.subr.mxu0 0.0
    %1696 = vmatpush1.msra.mxu0 0.0
    %1697 = vmatprep.subr.mxu0 0.0
    %1698 = vmatpush1.msra.mxu0 0.0
    %1699 = vmatprep.subr.mxu0 0.0
    %1700 = vmatpush1.msra.mxu0 0.0
    %1701 = vmatprep.subr.mxu0 0.0
    %1702 = vmatpush1.msra.mxu0 0.0
    %1703 = vmatprep.subr.mxu0 0.0
    %1704 = vmatpush1.msra.mxu0 0.0
    %1705 = vmatprep.subr.mxu0 0.0
    %1706 = vmatpush1.msra.mxu0 0.0
    %1707 = vmatprep.subr.mxu0 0.0
    %1708 = vmatpush1.msra.mxu0 0.0
    %1709 = vmatprep.subr.mxu0 0.0
    %1710 = vmatpush1.msra.mxu0 0.0
    %1711 = vmatprep.subr.mxu0 0.0
    %1712 = vmatpush1.msra.mxu0 0.0
    %1713 = vmatprep.subr.mxu0 0.0
    %1714 = vmatpush1.msra.mxu0 0.0
    %1715 = vmatprep.subr.mxu0 0.0
    %1716 = vmatpush1.msra.mxu0 0.0
    %1717 = vmatprep.mubr.f32.mxu0 0.0
    %1718 = vmatmul.mubr.f32.gmra.mrb[0].mxu0 %v1648
    %v1719 = vpop.f32.mrb[0].mxu0
    %v1720 = vadd.f32 0.0, %v1719
    %v1721 = vpop.f32.mrb[0].mxu0
    %1722 = vmatprep.mubr.f32.mxu0 0.0
    %1723 = vmatmul.mubr.f32.gmra.mrb[0].mxu0 %v1651
    %v1724 = vpop.f32.mrb[0].mxu0
    %v1725 = vadd.f32 0.0, %v1724
    %v1726 = vpop.f32.mrb[0].mxu0
    %1727 = vdwg.mxu0
    %v1729 = vsel %vm1558, %v1641, 0
    %v1732 = vsel %vm1558, %v1642, 0
    %1734 = vmatprep.subr.mxu0 0.0
    %1735 = vmatpush1.msra.mxu0 %v1075
    %1736 = vmatprep.subr.mxu0 0.0
    %1737 = vmatpush1.msra.mxu0 %v1143
    %1738 = vmatprep.subr.mxu0 0.0
    %1739 = vmatpush1.msra.mxu0 0.0
    %1740 = vmatprep.subr.mxu0 0.0
    %1741 = vmatpush1.msra.mxu0 0.0
    %1742 = vmatprep.subr.mxu0 0.0
    %1743 = vmatpush1.msra.mxu0 0.0
    %1744 = vmatprep.subr.mxu0 0.0
    %1745 = vmatpush1.msra.mxu0 0.0
    %1746 = vmatprep.subr.mxu0 0.0
    %1747 = vmatpush1.msra.mxu0 0.0
    %1748 = vmatprep.subr.mxu0 0.0
    %1749 = vmatpush1.msra.mxu0 0.0
    %1750 = vmatprep.subr.mxu0 0.0
    %1751 = vmatpush1.msra.mxu0 0.0
    %1752 = vmatprep.subr.mxu0 0.0
    %1753 = vmatpush1.msra.mxu0 0.0
    %1754 = vmatprep.subr.mxu0 0.0
    %1755 = vmatpush1.msra.mxu0 0.0
    %1756 = vmatprep.subr.mxu0 0.0
    %1757 = vmatpush1.msra.mxu0 0.0
    %1758 = vmatprep.subr.mxu0 0.0
    %1759 = vmatpush1.msra.mxu0 0.0
    %1760 = vmatprep.subr.mxu0 0.0
    %1761 = vmatpush1.msra.mxu0 0.0
    %1762 = vmatprep.subr.mxu0 0.0
    %1763 = vmatpush1.msra.mxu0 0.0
    %1764 = vmatprep.subr.mxu0 0.0
    %1765 = vmatpush1.msra.mxu0 0.0
    %1766 = vmatprep.subr.mxu0 0.0
    %1767 = vmatpush1.msra.mxu0 0.0
    %1768 = vmatprep.subr.mxu0 0.0
    %1769 = vmatpush1.msra.mxu0 0.0
    %1770 = vmatprep.subr.mxu0 0.0
    %1771 = vmatpush1.msra.mxu0 0.0
    %1772 = vmatprep.subr.mxu0 0.0
    %1773 = vmatpush1.msra.mxu0 0.0
    %1774 = vmatprep.subr.mxu0 0.0
    %1775 = vmatpush1.msra.mxu0 0.0
    %1776 = vmatprep.subr.mxu0 0.0
    %1777 = vmatpush1.msra.mxu0 0.0
    %1778 = vmatprep.subr.mxu0 0.0
    %1779 = vmatpush1.msra.mxu0 0.0
    %1780 = vmatprep.subr.mxu0 0.0
    %1781 = vmatpush1.msra.mxu0 0.0
    %1782 = vmatprep.subr.mxu0 0.0
    %1783 = vmatpush1.msra.mxu0 0.0
    %1784 = vmatprep.subr.mxu0 0.0
    %1785 = vmatpush1.msra.mxu0 0.0
    %1786 = vmatprep.subr.mxu0 0.0
    %1787 = vmatpush1.msra.mxu0 0.0
    %1788 = vmatprep.subr.mxu0 0.0
    %1789 = vmatpush1.msra.mxu0 0.0
    %1790 = vmatprep.subr.mxu0 0.0
    %1791 = vmatpush1.msra.mxu0 0.0
    %1792 = vmatprep.subr.mxu0 0.0
    %1793 = vmatpush1.msra.mxu0 0.0
    %1794 = vmatprep.subr.mxu0 0.0
    %1795 = vmatpush1.msra.mxu0 0.0
    %1796 = vmatprep.subr.mxu0 0.0
    %1797 = vmatpush1.msra.mxu0 0.0
    %1798 = vmatprep.mubr.f32.mxu0 0.0
    %1799 = vmatmul.mubr.f32.gmra.mrb[0].mxu0 %v1729
    %v1800 = vpop.f32.mrb[0].mxu0
    %v1801 = vadd.f32 0.0, %v1800
    %v1802 = vpop.f32.mrb[0].mxu0
    %1803 = vmatprep.mubr.f32.mxu0 0.0
    %1804 = vmatmul.mubr.f32.gmra.mrb[0].mxu0 %v1732
    %v1805 = vpop.f32.mrb[0].mxu0
    %v1806 = vadd.f32 0.0, %v1805
    %v1807 = vpop.f32.mrb[0].mxu0
    %1808 = vdwg.mxu0
    %v1810 = vsel %vm1558, %v1643, 0
    %v1813 = vsel %vm1558, %v1644, 0
    %1815 = vmatprep.subr.mxu0 0.0
    %1816 = vmatpush1.msra.mxu0 %v1076
    %1817 = vmatprep.subr.mxu0 0.0
    %1818 = vmatpush1.msra.mxu0 %v1144
    %1819 = vmatprep.subr.mxu0 0.0
    %1820 = vmatpush1.msra.mxu0 0.0
    %1821 = vmatprep.subr.mxu0 0.0
    %1822 = vmatpush1.msra.mxu0 0.0
    %1823 = vmatprep.subr.mxu0 0.0
    %1824 = vmatpush1.msra.mxu0 0.0
    %1825 = vmatprep.subr.mxu0 0.0
    %1826 = vmatpush1.msra.mxu0 0.0
    %1827 = vmatprep.subr.mxu0 0.0
    %1828 = vmatpush1.msra.mxu0 0.0
    %1829 = vmatprep.subr.mxu0 0.0
    %1830 = vmatpush1.msra.mxu0 0.0
    %1831 = vmatprep.subr.mxu0 0.0
    %1832 = vmatpush1.msra.mxu0 0.0
    %1833 = vmatprep.subr.mxu0 0.0
    %1834 = vmatpush1.msra.mxu0 0.0
    %1835 = vmatprep.subr.mxu0 0.0
    %1836 = vmatpush1.msra.mxu0 0.0
    %1837 = vmatprep.subr.mxu0 0.0
    %1838 = vmatpush1.msra.mxu0 0.0
    %1839 = vmatprep.subr.mxu0 0.0
    %1840 = vmatpush1.msra.mxu0 0.0
    %1841 = vmatprep.subr.mxu0 0.0
    %1842 = vmatpush1.msra.mxu0 0.0
    %1843 = vmatprep.subr.mxu0 0.0
    %1844 = vmatpush1.msra.mxu0 0.0
    %1845 = vmatprep.subr.mxu0 0.0
    %1846 = vmatpush1.msra.mxu0 0.0
    %1847 = vmatprep.subr.mxu0 0.0
    %1848 = vmatpush1.msra.mxu0 0.0
    %1849 = vmatprep.subr.mxu0 0.0
    %1850 = vmatpush1.msra.mxu0 0.0
    %1851 = vmatprep.subr.mxu0 0.0
    %1852 = vmatpush1.msra.mxu0 0.0
    %1853 = vmatprep.subr.mxu0 0.0
    %1854 = vmatpush1.msra.mxu0 0.0
    %1855 = vmatprep.subr.mxu0 0.0
    %1856 = vmatpush1.msra.mxu0 0.0
    %1857 = vmatprep.subr.mxu0 0.0
    %1858 = vmatpush1.msra.mxu0 0.0
    %1859 = vmatprep.subr.mxu0 0.0
    %1860 = vmatpush1.msra.mxu0 0.0
    %1861 = vmatprep.subr.mxu0 0.0
    %1862 = vmatpush1.msra.mxu0 0.0
    %1863 = vmatprep.subr.mxu0 0.0
    %1864 = vmatpush1.msra.mxu0 0.0
    %1865 = vmatprep.subr.mxu0 0.0
    %1866 = vmatpush1.msra.mxu0 0.0
    %1867 = vmatprep.subr.mxu0 0.0
    %1868 = vmatpush1.msra.mxu0 0.0
    %1869 = vmatprep.subr.mxu0 0.0
    %1870 = vmatpush1.msra.mxu0 0.0
    %1871 = vmatprep.subr.mxu0 0.0
    %1872 = vmatpush1.msra.mxu0 0.0
    %1873 = vmatprep.subr.mxu0 0.0
    %1874 = vmatpush1.msra.mxu0 0.0
    %1875 = vmatprep.subr.mxu0 0.0
    %1876 = vmatpush1.msra.mxu0 0.0
    %1877 = vmatprep.subr.mxu0 0.0
    %1878 = vmatpush1.msra.mxu0 0.0
    %1879 = vmatprep.mubr.f32.mxu0 0.0
    %1880 = vmatmul.mubr.f32.gmra.mrb[0].mxu0 %v1810
    %v1881 = vpop.f32.mrb[0].mxu0
    %v1882 = vadd.f32 0.0, %v1881
    %v1883 = vpop.f32.mrb[0].mxu0
    %1884 = vmatprep.mubr.f32.mxu0 0.0
    %1885 = vmatmul.mubr.f32.gmra.mrb[0].mxu0 %v1813
    %v1886 = vpop.f32.mrb[0].mxu0
    %v1887 = vadd.f32 0.0, %v1886
    %v1888 = vpop.f32.mrb[0].mxu0
    %1889 = vdwg.mxu0
    %v1891 = vsel %vm1558, %v1645, 0
    %v1894 = vsel %vm1558, %v1646, 0
    %1896 = vmatprep.subr.mxu0 0.0
    %1897 = vmatpush1.msra.mxu0 %v1077
    %1898 = vmatprep.subr.mxu0 0.0
    %1899 = vmatpush1.msra.mxu0 %v1145
    %1900 = vmatprep.subr.mxu0 0.0
    %1901 = vmatpush1.msra.mxu0 0.0
    %1902 = vmatprep.subr.mxu0 0.0
    %1903 = vmatpush1.msra.mxu0 0.0
    %1904 = vmatprep.subr.mxu0 0.0
    %1905 = vmatpush1.msra.mxu0 0.0
    %1906 = vmatprep.subr.mxu0 0.0
    %1907 = vmatpush1.msra.mxu0 0.0
    %1908 = vmatprep.subr.mxu0 0.0
    %1909 = vmatpush1.msra.mxu0 0.0
    %1910 = vmatprep.subr.mxu0 0.0
    %1911 = vmatpush1.msra.mxu0 0.0
    %1912 = vmatprep.subr.mxu0 0.0
    %1913 = vmatpush1.msra.mxu0 0.0
    %1914 = vmatprep.subr.mxu0 0.0
    %1915 = vmatpush1.msra.mxu0 0.0
    %1916 = vmatprep.subr.mxu0 0.0
    %1917 = vmatpush1.msra.mxu0 0.0
    %1918 = vmatprep.subr.mxu0 0.0
    %1919 = vmatpush1.msra.mxu0 0.0
    %1920 = vmatprep.subr.mxu0 0.0
    %1921 = vmatpush1.msra.mxu0 0.0
    %1922 = vmatprep.subr.mxu0 0.0
    %1923 = vmatpush1.msra.mxu0 0.0
    %1924 = vmatprep.subr.mxu0 0.0
    %1925 = vmatpush1.msra.mxu0 0.0
    %1926 = vmatprep.subr.mxu0 0.0
    %1927 = vmatpush1.msra.mxu0 0.0
    %1928 = vmatprep.subr.mxu0 0.0
    %1929 = vmatpush1.msra.mxu0 0.0
    %1930 = vmatprep.subr.mxu0 0.0
    %1931 = vmatpush1.msra.mxu0 0.0
    %1932 = vmatprep.subr.mxu0 0.0
    %1933 = vmatpush1.msra.mxu0 0.0
    %1934 = vmatprep.subr.mxu0 0.0
    %1935 = vmatpush1.msra.mxu0 0.0
    %1936 = vmatprep.subr.mxu0 0.0
    %1937 = vmatpush1.msra.mxu0 0.0
    %1938 = vmatprep.subr.mxu0 0.0
    %1939 = vmatpush1.msra.mxu0 0.0
    %1940 = vmatprep.subr.mxu0 0.0
    %1941 = vmatpush1.msra.mxu0 0.0
    %1942 = vmatprep.subr.mxu0 0.0
    %1943 = vmatpush1.msra.mxu0 0.0
    %1944 = vmatprep.subr.mxu0 0.0
    %1945 = vmatpush1.msra.mxu0 0.0
    %1946 = vmatprep.subr.mxu0 0.0
    %1947 = vmatpush1.msra.mxu0 0.0
    %1948 = vmatprep.subr.mxu0 0.0
    %1949 = vmatpush1.msra.mxu0 0.0
    %1950 = vmatprep.subr.mxu0 0.0
    %1951 = vmatpush1.msra.mxu0 0.0
    %1952 = vmatprep.subr.mxu0 0.0
    %1953 = vmatpush1.msra.mxu0 0.0
    %1954 = vmatprep.subr.mxu0 0.0
    %1955 = vmatpush1.msra.mxu0 0.0
    %1956 = vmatprep.subr.mxu0 0.0
    %1957 = vmatpush1.msra.mxu0 0.0
    %1958 = vmatprep.subr.mxu0 0.0
    %1959 = vmatpush1.msra.mxu0 0.0
    %1960 = vmatprep.mubr.f32.mxu0 0.0
    %1961 = vmatmul.mubr.f32.gmra.mrb[0].mxu0 %v1891
    %v1962 = vpop.f32.mrb[0].mxu0
    %v1963 = vadd.f32 0.0, %v1962
    %v1964 = vpop.f32.mrb[0].mxu0
    %1965 = vmatprep.mubr.f32.mxu0 0.0
    %1966 = vmatmul.mubr.f32.gmra.mrb[0].mxu0 %v1894
    %v1967 = vpop.f32.mrb[0].mxu0
    %v1968 = vadd.f32 0.0, %v1967
    %v1969 = vpop.f32.mrb[0].mxu0
    %1970 = vdwg.mxu0
    %v1971 = vcombine.low %v1720, %v1882
    %v1972 = vcombine.high %v1720, %v1882
    %v1974 = vunpack.c.l.s4 1983009808
    %v1975 = vunpack.c.0.s8 %v1974
    %v1976 = vlaneseq
    %v1977 = vshrl.u32 %v1976, 7
    %v1978 = vsub.s32 %v1975, %v1977
    %v1979 = vrot.slane %v1971, %v1978
    %v1981 = vunpack.c.l.s4 1983009808
    %v1982 = vunpack.c.0.s8 %v1981
    %v1983 = vlaneseq
    %v1984 = vshrl.u32 %v1983, 7
    %v1985 = vsub.s32 %v1982, %v1984
    %v1986 = vrot.slane %v1972, %v1985
    %v1987 = vcombine.low %v1801, %v1963
    %v1988 = vcombine.high %v1801, %v1963
    %v1990 = vunpack.c.l.s4 1983009808
    %v1991 = vunpack.c.0.s8 %v1990
    %v1992 = vlaneseq
    %v1993 = vshrl.u32 %v1992, 7
    %v1994 = vsub.s32 %v1991, %v1993
    %v1995 = vrot.slane %v1987, %v1994
    %v1997 = vunpack.c.l.s4 1983009808
    %v1998 = vunpack.c.0.s8 %v1997
    %v1999 = vlaneseq
    %v2000 = vshrl.u32 %v1999, 7
    %v2001 = vsub.s32 %v1998, %v2000
    %v2002 = vrot.slane %v1988, %v2001
    %v2003 = vcombine.low %v1979, %v1995
    %v2004 = vcombine.high %v1979, %v1995
    %v2006 = vunpack.c.l.s4 1934713408
    %v2007 = vunpack.c.0.s8 %v2006
    %v2008 = vlaneseq
    %v2009 = vshrl.u32 %v2008, 7
    %v2010 = vsub.s32 %v2007, %v2009
    %v2011 = vrot.slane %v2003, %v2010
    %v2013 = vunpack.c.l.s4 1934713408
    %v2014 = vunpack.c.0.s8 %v2013
    %v2015 = vlaneseq
    %v2016 = vshrl.u32 %v2015, 7
    %v2017 = vsub.s32 %v2014, %v2016
    %v2018 = vrot.slane %v2004, %v2017
    %v2019 = vcombine.low %v1986, %v2002
    %v2020 = vcombine.high %v1986, %v2002
    %v2022 = vunpack.c.l.s4 1934713408
    %v2023 = vunpack.c.0.s8 %v2022
    %v2024 = vlaneseq
    %v2025 = vshrl.u32 %v2024, 7
    %v2026 = vsub.s32 %v2023, %v2025
    %v2027 = vrot.slane %v2019, %v2026
    %v2029 = vunpack.c.l.s4 1934713408
    %v2030 = vunpack.c.0.s8 %v2029
    %v2031 = vlaneseq
    %v2032 = vshrl.u32 %v2031, 7
    %v2033 = vsub.s32 %v2030, %v2032
    %v2034 = vrot.slane %v2020, %v2033
    %v2035 = vcombine.high %v2011, 0.0
    %v2036 = vcombine.high %v2018, 0.0
    %v2037 = vcombine.high %v2027, 0.0
    %v2038 = vcombine.high %v2034, 0.0
    %v2039 = vcombine.low %v1725, %v1887
    %v2040 = vcombine.high %v1725, %v1887
    %v2042 = vunpack.c.l.s4 1983009808
    %v2043 = vunpack.c.0.s8 %v2042
    %v2044 = vlaneseq
    %v2045 = vshrl.u32 %v2044, 7
    %v2046 = vsub.s32 %v2043, %v2045
    %v2047 = vrot.slane %v2039, %v2046
    %v2049 = vunpack.c.l.s4 1983009808
    %v2050 = vunpack.c.0.s8 %v2049
    %v2051 = vlaneseq
    %v2052 = vshrl.u32 %v2051, 7
    %v2053 = vsub.s32 %v2050, %v2052
    %v2054 = vrot.slane %v2040, %v2053
    %v2055 = vcombine.low %v1806, %v1968
    %v2056 = vcombine.high %v1806, %v1968
    %v2058 = vunpack.c.l.s4 1983009808
    %v2059 = vunpack.c.0.s8 %v2058
    %v2060 = vlaneseq
    %v2061 = vshrl.u32 %v2060, 7
    %v2062 = vsub.s32 %v2059, %v2061
    %v2063 = vrot.slane %v2055, %v2062
    %v2065 = vunpack.c.l.s4 1983009808
    %v2066 = vunpack.c.0.s8 %v2065
    %v2067 = vlaneseq
    %v2068 = vshrl.u32 %v2067, 7
    %v2069 = vsub.s32 %v2066, %v2068
    %v2070 = vrot.slane %v2056, %v2069
    %v2071 = vcombine.low %v2047, %v2063
    %v2072 = vcombine.high %v2047, %v2063
    %v2074 = vunpack.c.l.s4 1934713408
    %v2075 = vunpack.c.0.s8 %v2074
    %v2076 = vlaneseq
    %v2077 = vshrl.u32 %v2076, 7
    %v2078 = vsub.s32 %v2075, %v2077
    %v2079 = vrot.slane %v2071, %v2078
    %v2081 = vunpack.c.l.s4 1934713408
    %v2082 = vunpack.c.0.s8 %v2081
    %v2083 = vlaneseq
    %v2084 = vshrl.u32 %v2083, 7
    %v2085 = vsub.s32 %v2082, %v2084
    %v2086 = vrot.slane %v2072, %v2085
    %v2087 = vcombine.low %v2054, %v2070
    %v2088 = vcombine.high %v2054, %v2070
    %v2090 = vunpack.c.l.s4 1934713408
    %v2091 = vunpack.c.0.s8 %v2090
    %v2092 = vlaneseq
    %v2093 = vshrl.u32 %v2092, 7
    %v2094 = vsub.s32 %v2091, %v2093
    %v2095 = vrot.slane %v2087, %v2094
    %v2097 = vunpack.c.l.s4 1934713408
    %v2098 = vunpack.c.0.s8 %v2097
    %v2099 = vlaneseq
    %v2100 = vshrl.u32 %v2099, 7
    %v2101 = vsub.s32 %v2098, %v2100
    %v2102 = vrot.slane %v2088, %v2101
    %v2103 = vcombine.high %v2079, 0.0
    %v2104 = vcombine.high %v2086, 0.0
    %v2105 = vcombine.high %v2095, 0.0
    %v2106 = vcombine.high %v2102, 0.0
    %v2107 = vcombine.low %v2011, %v2018
    %v2109 = vunpack.c.l.s4 1983009808
    %v2110 = vunpack.c.0.s8 %v2109
    %v2111 = vlaneseq
    %v2112 = vshrl.u32 %v2111, 7
    %v2113 = vsub.s32 %v2110, %v2112
    %v2114 = vrot.slane %v2107, %v2113
    %v2115 = vcombine.low %v2035, %v2036
    %v2117 = vunpack.c.l.s4 1983009808
    %v2118 = vunpack.c.0.s8 %v2117
    %v2119 = vlaneseq
    %v2120 = vshrl.u32 %v2119, 7
    %v2121 = vsub.s32 %v2118, %v2120
    %v2122 = vrot.slane %v2115, %v2121
    %v2123 = vcombine.low %v2027, %v2034
    %v2125 = vunpack.c.l.s4 1983009808
    %v2126 = vunpack.c.0.s8 %v2125
    %v2127 = vlaneseq
    %v2128 = vshrl.u32 %v2127, 7
    %v2129 = vsub.s32 %v2126, %v2128
    %v2130 = vrot.slane %v2123, %v2129
    %v2131 = vcombine.low %v2037, %v2038
    %v2133 = vunpack.c.l.s4 1983009808
    %v2134 = vunpack.c.0.s8 %v2133
    %v2135 = vlaneseq
    %v2136 = vshrl.u32 %v2135, 7
    %v2137 = vsub.s32 %v2134, %v2136
    %v2138 = vrot.slane %v2131, %v2137
    %v2139 = vcombine.low %v2114, %v2122
    %v2140 = vcombine.high %v2114, %v2122
    %v2142 = vunpack.c.l.s4 1934713408
    %v2143 = vunpack.c.0.s8 %v2142
    %v2144 = vlaneseq
    %v2145 = vshrl.u32 %v2144, 7
    %v2146 = vsub.s32 %v2143, %v2145
    %v2147 = vrot.slane %v2139, %v2146
    %v2149 = vunpack.c.l.s4 1934713408
    %v2150 = vunpack.c.0.s8 %v2149
    %v2151 = vlaneseq
    %v2152 = vshrl.u32 %v2151, 7
    %v2153 = vsub.s32 %v2150, %v2152
    %v2154 = vrot.slane %v2140, %v2153
    %v2155 = vcombine.low %v2130, %v2138
    %v2156 = vcombine.high %v2130, %v2138
    %v2158 = vunpack.c.l.s4 1934713408
    %v2159 = vunpack.c.0.s8 %v2158
    %v2160 = vlaneseq
    %v2161 = vshrl.u32 %v2160, 7
    %v2162 = vsub.s32 %v2159, %v2161
    %v2163 = vrot.slane %v2155, %v2162
    %v2165 = vunpack.c.l.s4 1934713408
    %v2166 = vunpack.c.0.s8 %v2165
    %v2167 = vlaneseq
    %v2168 = vshrl.u32 %v2167, 7
    %v2169 = vsub.s32 %v2166, %v2168
    %v2170 = vrot.slane %v2156, %v2169
    %v2171 = vcombine.low %v2147, %v2163
    %v2172 = vcombine.high %v2147, %v2163
    %v2173 = vcombine.low %v2154, %v2170
    %v2174 = vcombine.high %v2154, %v2170
    %v2175 = vcombine.low %v2079, %v2086
    %v2177 = vunpack.c.l.s4 1983009808
    %v2178 = vunpack.c.0.s8 %v2177
    %v2179 = vlaneseq
    %v2180 = vshrl.u32 %v2179, 7
    %v2181 = vsub.s32 %v2178, %v2180
    %v2182 = vrot.slane %v2175, %v2181
    %v2183 = vcombine.low %v2103, %v2104
    %v2185 = vunpack.c.l.s4 1983009808
    %v2186 = vunpack.c.0.s8 %v2185
    %v2187 = vlaneseq
    %v2188 = vshrl.u32 %v2187, 7
    %v2189 = vsub.s32 %v2186, %v2188
    %v2190 = vrot.slane %v2183, %v2189
    %v2191 = vcombine.low %v2095, %v2102
    %v2193 = vunpack.c.l.s4 1983009808
    %v2194 = vunpack.c.0.s8 %v2193
    %v2195 = vlaneseq
    %v2196 = vshrl.u32 %v2195, 7
    %v2197 = vsub.s32 %v2194, %v2196
    %v2198 = vrot.slane %v2191, %v2197
    %v2199 = vcombine.low %v2105, %v2106
    %v2201 = vunpack.c.l.s4 1983009808
    %v2202 = vunpack.c.0.s8 %v2201
    %v2203 = vlaneseq
    %v2204 = vshrl.u32 %v2203, 7
    %v2205 = vsub.s32 %v2202, %v2204
    %v2206 = vrot.slane %v2199, %v2205
    %v2207 = vcombine.low %v2182, %v2190
    %v2208 = vcombine.high %v2182, %v2190
    %v2210 = vunpack.c.l.s4 1934713408
    %v2211 = vunpack.c.0.s8 %v2210
    %v2212 = vlaneseq
    %v2213 = vshrl.u32 %v2212, 7
    %v2214 = vsub.s32 %v2211, %v2213
    %v2215 = vrot.slane %v2207, %v2214
    %v2217 = vunpack.c.l.s4 1934713408
    %v2218 = vunpack.c.0.s8 %v2217
    %v2219 = vlaneseq
    %v2220 = vshrl.u32 %v2219, 7
    %v2221 = vsub.s32 %v2218, %v2220
    %v2222 = vrot.slane %v2208, %v2221
    %v2223 = vcombine.low %v2198, %v2206
    %v2224 = vcombine.high %v2198, %v2206
    %v2226 = vunpack.c.l.s4 1934713408
    %v2227 = vunpack.c.0.s8 %v2226
    %v2228 = vlaneseq
    %v2229 = vshrl.u32 %v2228, 7
    %v2230 = vsub.s32 %v2227, %v2229
    %v2231 = vrot.slane %v2223, %v2230
    %v2233 = vunpack.c.l.s4 1934713408
    %v2234 = vunpack.c.0.s8 %v2233
    %v2235 = vlaneseq
    %v2236 = vshrl.u32 %v2235, 7
    %v2237 = vsub.s32 %v2234, %v2236
    %v2238 = vrot.slane %v2224, %v2237
    %v2239 = vcombine.low %v2215, %v2231
    %v2240 = vcombine.high %v2215, %v2231
    %v2241 = vcombine.low %v2222, %v2238
    %v2242 = vcombine.high %v2222, %v2238
    %2245 = vrot.lane.b32.xlu0 %v2172, 8
    %v2246 = vpop.permute.xlu0 %2245
    %2247 = vrot.lane.b32.xlu0 %v2240, 8
    %v2248 = vpop.permute.xlu0 %2247
    %2253 = vrot.lane.b32.xlu0 %v2173, 16
    %v2254 = vpop.permute.xlu0 %2253
    %2255 = vrot.lane.b32.xlu0 %v2241, 16
    %v2256 = vpop.permute.xlu0 %2255
    %2261 = vrot.lane.b32.xlu0 %v2174, 24
    %v2262 = vpop.permute.xlu0 %2261
    %2263 = vrot.lane.b32.xlu0 %v2242, 24
    %v2264 = vpop.permute.xlu0 %2263
    %v2267 = vsel %vm1146, %v2171, %v2246
    %v2268 = vsel %vm1146, %v2239, %v2248
    %v2269 = vsel %vm1558, %v2267, %v2254
    %v2270 = vsel %vm1558, %v2268, %v2256
    %vm2271 = vcmask 195584
    %v2272 = vsel %vm2271, %v2269, %v2262
    %v2273 = vsel %vm2271, %v2270, %v2264
    %v2274 = vld [vmem:[%s4] sm:$0xff]
    %v2275 = vld [vmem:[%s4 + $0x8] sm:$0xff]
    %v2276 = vld [vmem:[%s4 + $0x10] sm:$0xff]
    %v2277 = vld [vmem:[%s4 + $0x18] sm:$0xff]
    %v2278 = vlaneseq
    %v2279 = vshrl.u32 %v2278, 7
    %v2280 = vsub.s32 1, %v2279
    %v2281 = vrot.slane %v81, %v2280
    %v2283 = vsel %vm95, %v2272, 0
    %v2286 = vsel %vm95, %v2273, 0
    %2288 = vmatprep.subr.mxu0 0.0
    %2289 = vmatpush1.msra.mxu0 %v2274
    %2290 = vmatprep.subr.mxu0 0.0
    %2291 = vmatpush1.msra.mxu0 %v2275
    %2292 = vmatprep.subr.mxu0 0.0
    %2293 = vmatpush1.msra.mxu0 %v2276
    %2294 = vmatprep.subr.mxu0 0.0
    %2295 = vmatpush1.msra.mxu0 %v2277
    %2296 = vmatprep.subr.mxu0 0.0
    %2297 = vmatpush1.msra.mxu0 0.0
    %2298 = vmatprep.subr.mxu0 0.0
    %2299 = vmatpush1.msra.mxu0 0.0
    %2300 = vmatprep.subr.mxu0 0.0
    %2301 = vmatpush1.msra.mxu0 0.0
    %2302 = vmatprep.subr.mxu0 0.0
    %2303 = vmatpush1.msra.mxu0 0.0
    %2304 = vmatprep.subr.mxu0 0.0
    %2305 = vmatpush1.msra.mxu0 0.0
    %2306 = vmatprep.subr.mxu0 0.0
    %2307 = vmatpush1.msra.mxu0 0.0
    %2308 = vmatprep.subr.mxu0 0.0
    %2309 = vmatpush1.msra.mxu0 0.0
    %2310 = vmatprep.subr.mxu0 0.0
    %2311 = vmatpush1.msra.mxu0 0.0
    %2312 = vmatprep.subr.mxu0 0.0
    %2313 = vmatpush1.msra.mxu0 0.0
    %2314 = vmatprep.subr.mxu0 0.0
    %2315 = vmatpush1.msra.mxu0 0.0
    %2316 = vmatprep.subr.mxu0 0.0
    %2317 = vmatpush1.msra.mxu0 0.0
    %2318 = vmatprep.subr.mxu0 0.0
    %2319 = vmatpush1.msra.mxu0 0.0
    %2320 = vmatprep.subr.mxu0 0.0
    %2321 = vmatpush1.msra.mxu0 0.0
    %2322 = vmatprep.subr.mxu0 0.0
    %2323 = vmatpush1.msra.mxu0 0.0
    %2324 = vmatprep.subr.mxu0 0.0
    %2325 = vmatpush1.msra.mxu0 0.0
    %2326 = vmatprep.subr.mxu0 0.0
    %2327 = vmatpush1.msra.mxu0 0.0
    %2328 = vmatprep.subr.mxu0 0.0
    %2329 = vmatpush1.msra.mxu0 0.0
    %2330 = vmatprep.subr.mxu0 0.0
    %2331 = vmatpush1.msra.mxu0 0.0
    %2332 = vmatprep.subr.mxu0 0.0
    %2333 = vmatpush1.msra.mxu0 0.0
    %2334 = vmatprep.subr.mxu0 0.0
    %2335 = vmatpush1.msra.mxu0 0.0
    %2336 = vmatprep.subr.mxu0 0.0
    %2337 = vmatpush1.msra.mxu0 0.0
    %2338 = vmatprep.subr.mxu0 0.0
    %2339 = vmatpush1.msra.mxu0 0.0
    %2340 = vmatprep.subr.mxu0 0.0
    %2341 = vmatpush1.msra.mxu0 0.0
    %2342 = vmatprep.subr.mxu0 0.0
    %2343 = vmatpush1.msra.mxu0 0.0
    %2344 = vmatprep.subr.mxu0 0.0
    %2345 = vmatpush1.msra.mxu0 0.0
    %2346 = vmatprep.subr.mxu0 0.0
    %2347 = vmatpush1.msra.mxu0 0.0
    %2348 = vmatprep.subr.mxu0 0.0
    %2349 = vmatpush1.msra.mxu0 0.0
    %2350 = vmatprep.subr.mxu0 0.0
    %2351 = vmatpush1.msra.mxu0 0.0
    %2352 = vmatprep.mubr.f32.mxu0 0.0
    %2353 = vmatmul.mubr.f32.gmra.mrb[0].mxu0 %v2283
    %v2354 = vpop.f32.mrb[0].mxu0
    %v2355 = vadd.f32 %v2281, %v2354
    %v2356 = vpop.f32.mrb[0].mxu0
    %2357 = vmatprep.mubr.f32.mxu0 0.0
    %2358 = vmatmul.mubr.f32.gmra.mrb[0].mxu0 %v2286
    %v2359 = vpop.f32.mrb[0].mxu0
    %v2360 = vadd.f32 %v2281, %v2359
    %v2361 = vpop.f32.mrb[0].mxu0
    %2362 = vdwg.mxu0
    %v2363 = vadd.f32 %v77, %v2355
    %v2364 = vadd.f32 %v78, %v2360
    %v2365 = vsel %vm95, %v2363, 0.0
    %2366 = vadd.xlane.f32.xlu0 %v2365
    %v2367 = vpop.xlane.xlu0 %2366
    %v2368 = vsel %vm95, %v2364, 0.0
    %2369 = vadd.xlane.f32.xlu0 %v2368
    %v2370 = vpop.xlane.xlu0 %2369
    %v2371 = vrcp.pop 32.0
    %v2372 = vmul.f32 %v2367, %v2371
    %v2373 = vmul.f32 %v2370, %v2371
    %v2374 = vsub.f32 %v2363, %v2372
    %v2375 = vsub.f32 %v2364, %v2373
    %v2376 = vmul.f32 %v2374, %v2374
    %v2377 = vmul.f32 %v2375, %v2375
    %v2378 = vsel %vm95, %v2376, 0.0
    %2379 = vadd.xlane.f32.xlu0 %v2378
    %v2380 = vpop.xlane.xlu0 %2379
    %v2381 = vsel %vm95, %v2377, 0.0
    %2382 = vadd.xlane.f32.xlu0 %v2381
    %v2383 = vpop.xlane.xlu0 %2382
    %v2384 = vmul.f32 %v2380, %v2371
    %v2385 = vmul.f32 %v2383, %v2371
    %v2386 = vadd.f32 %v2384, 1e-05
    %v2387 = vadd.f32 %v2385, 1e-05
    %v2388 = vrsqrt.pop %v2386
    %v2389 = vrsqrt.pop %v2387
    %v2390 = vmul.f32 %v2374, %v2388
    %v2391 = vmul.f32 %v2375, %v2389
    %v2392 = vlaneseq
    %v2393 = vshrl.u32 %v2392, 7
    %v2394 = vsub.s32 3, %v2393
    %v2395 = vrot.slane %v81, %v2394
    %v2396 = vmul.f32 %v2390, %v2395
    %v2397 = vmul.f32 %v2391, %v2395
    %v2398 = vlaneseq
    %v2399 = vshrl.u32 %v2398, 7
    %v2400 = vsub.s32 4, %v2399
    %v2401 = vrot.slane %v81, %v2400
    %v2402 = vadd.f32 %v2396, %v2401
    %v2403 = vadd.f32 %v2397, %v2401
    %v2404 = vld [vmem:[#allocation7] sm:$0xff]
    %v2405 = vld [vmem:[#allocation7 + $0x8] sm:$0xff]
    %v2406 = vld [vmem:[#allocation7 + $0x10] sm:$0xff]
    %v2407 = vld [vmem:[#allocation7 + $0x18] sm:$0xff]
    %v2408 = vld [vmem:[%s8] sm:$0x1]
    %v2410 = vlaneseq
    %v2411 = vshrl.u32 %v2410, 7
    %v2412 = vsub.s32 0, %v2411
    %v2413 = vrot.slane %v2408, %v2412
    %v2416 = vsel %vm95, %v2402, 0
    %v2419 = vsel %vm95, %v2403, 0
    %2421 = vmatprep.subr.mxu0 0.0
    %2422 = vmatpush1.msra.mxu0 %v2404
    %2423 = vmatprep.subr.mxu0 0.0
    %2424 = vmatpush1.msra.mxu0 %v2405
    %2425 = vmatprep.subr.mxu0 0.0
    %2426 = vmatpush1.msra.mxu0 %v2406
    %2427 = vmatprep.subr.mxu0 0.0
    %2428 = vmatpush1.msra.mxu0 %v2407
    %2429 = vmatprep.subr.mxu0 0.0
    %2430 = vmatpush1.msra.mxu0 0.0
    %2431 = vmatprep.subr.mxu0 0.0
    %2432 = vmatpush1.msra.mxu0 0.0
    %2433 = vmatprep.subr.mxu0 0.0
    %2434 = vmatpush1.msra.mxu0 0.0
    %2435 = vmatprep.subr.mxu0 0.0
    %2436 = vmatpush1.msra.mxu0 0.0
    %2437 = vmatprep.subr.mxu0 0.0
    %2438 = vmatpush1.msra.mxu0 0.0
    %2439 = vmatprep.subr.mxu0 0.0
    %2440 = vmatpush1.msra.mxu0 0.0
    %2441 = vmatprep.subr.mxu0 0.0
    %2442 = vmatpush1.msra.mxu0 0.0
    %2443 = vmatprep.subr.mxu0 0.0
    %2444 = vmatpush1.msra.mxu0 0.0
    %2445 = vmatprep.subr.mxu0 0.0
    %2446 = vmatpush1.msra.mxu0 0.0
    %2447 = vmatprep.subr.mxu0 0.0
    %2448 = vmatpush1.msra.mxu0 0.0
    %2449 = vmatprep.subr.mxu0 0.0
    %2450 = vmatpush1.msra.mxu0 0.0
    %2451 = vmatprep.subr.mxu0 0.0
    %2452 = vmatpush1.msra.mxu0 0.0
    %2453 = vmatprep.subr.mxu0 0.0
    %2454 = vmatpush1.msra.mxu0 0.0
    %2455 = vmatprep.subr.mxu0 0.0
    %2456 = vmatpush1.msra.mxu0 0.0
    %2457 = vmatprep.subr.mxu0 0.0
    %2458 = vmatpush1.msra.mxu0 0.0
    %2459 = vmatprep.subr.mxu0 0.0
    %2460 = vmatpush1.msra.mxu0 0.0
    %2461 = vmatprep.subr.mxu0 0.0
    %2462 = vmatpush1.msra.mxu0 0.0
    %2463 = vmatprep.subr.mxu0 0.0
    %2464 = vmatpush1.msra.mxu0 0.0
    %2465 = vmatprep.subr.mxu0 0.0
    %2466 = vmatpush1.msra.mxu0 0.0
    %2467 = vmatprep.subr.mxu0 0.0
    %2468 = vmatpush1.msra.mxu0 0.0
    %2469 = vmatprep.subr.mxu0 0.0
    %2470 = vmatpush1.msra.mxu0 0.0
    %2471 = vmatprep.subr.mxu0 0.0
    %2472 = vmatpush1.msra.mxu0 0.0
    %2473 = vmatprep.subr.mxu0 0.0
    %2474 = vmatpush1.msra.mxu0 0.0
    %2475 = vmatprep.subr.mxu0 0.0
    %2476 = vmatpush1.msra.mxu0 0.0
    %2477 = vmatprep.subr.mxu0 0.0
    %2478 = vmatpush1.msra.mxu0 0.0
    %2479 = vmatprep.subr.mxu0 0.0
    %2480 = vmatpush1.msra.mxu0 0.0
    %2481 = vmatprep.subr.mxu0 0.0
    %2482 = vmatpush1.msra.mxu0 0.0
    %2483 = vmatprep.subr.mxu0 0.0
    %2484 = vmatpush1.msra.mxu0 0.0
    %2485 = vmatprep.mubr.f32.mxu0 0.0
    %2486 = vmatmul.mubr.f32.gmra.mrb[0].mxu0 %v2416
    %v2487 = vpop.f32.mrb[0].mxu0
    %v2488 = vadd.f32 %v2413, %v2487
    %v2489 = vpop.f32.mrb[0].mxu0
    %2490 = vmatprep.mubr.f32.mxu0 0.0
    %2491 = vmatmul.mubr.f32.gmra.mrb[0].mxu0 %v2419
    %v2492 = vpop.f32.mrb[0].mxu0
    %v2493 = vadd.f32 %v2413, %v2492
    %v2494 = vpop.f32.mrb[0].mxu0
    %2495 = vdwg.mxu0
    %v2496 = vmax.f32 %v2488, 0.0
    %v2497 = vmax.f32 %v2493, 0.0
    %v2498 = vld [vmem:[%s6] sm:$0xff]
    %v2499 = vld [vmem:[%s6 + $0x8] sm:$0xff]
    %v2500 = vld [vmem:[%s6 + $0x10] sm:$0xff]
    %v2501 = vld [vmem:[%s6 + $0x18] sm:$0xff]
    %v2502 = vld [vmem:[%s6 + $0x20] sm:$0xff]
    %v2503 = vld [vmem:[%s6 + $0x28] sm:$0xff]
    %v2504 = vld [vmem:[%s6 + $0x30] sm:$0xff]
    %v2505 = vld [vmem:[%s6 + $0x38] sm:$0xff]
    %v2506 = vlaneseq
    %v2507 = vshrl.u32 %v2506, 7
    %v2508 = vsub.s32 2, %v2507
    %v2509 = vrot.slane %v81, %v2508
    %vm2510 = vcmask 523264
    %v2512 = vsel %vm2510, %v2496, 0
    %v2515 = vsel %vm2510, %v2497, 0
    %2517 = vmatprep.subr.mxu0 0.0
    %2518 = vmatpush1.msra.mxu0 %v2498
    %2519 = vmatprep.subr.mxu0 0.0
    %2520 = vmatpush1.msra.mxu0 %v2499
    %2521 = vmatprep.subr.mxu0 0.0
    %2522 = vmatpush1.msra.mxu0 %v2500
    %2523 = vmatprep.subr.mxu0 0.0
    %2524 = vmatpush1.msra.mxu0 %v2501
    %2525 = vmatprep.subr.mxu0 0.0
    %2526 = vmatpush1.msra.mxu0 %v2502
    %2527 = vmatprep.subr.mxu0 0.0
    %2528 = vmatpush1.msra.mxu0 %v2503
    %2529 = vmatprep.subr.mxu0 0.0
    %2530 = vmatpush1.msra.mxu0 %v2504
    %2531 = vmatprep.subr.mxu0 0.0
    %2532 = vmatpush1.msra.mxu0 %v2505
    %2533 = vmatprep.subr.mxu0 0.0
    %2534 = vmatpush1.msra.mxu0 0.0
    %2535 = vmatprep.subr.mxu0 0.0
    %2536 = vmatpush1.msra.mxu0 0.0
    %2537 = vmatprep.subr.mxu0 0.0
    %2538 = vmatpush1.msra.mxu0 0.0
    %2539 = vmatprep.subr.mxu0 0.0
    %2540 = vmatpush1.msra.mxu0 0.0
    %2541 = vmatprep.subr.mxu0 0.0
    %2542 = vmatpush1.msra.mxu0 0.0
    %2543 = vmatprep.subr.mxu0 0.0
    %2544 = vmatpush1.msra.mxu0 0.0
    %2545 = vmatprep.subr.mxu0 0.0
    %2546 = vmatpush1.msra.mxu0 0.0
    %2547 = vmatprep.subr.mxu0 0.0
    %2548 = vmatpush1.msra.mxu0 0.0
    %2549 = vmatprep.subr.mxu0 0.0
    %2550 = vmatpush1.msra.mxu0 0.0
    %2551 = vmatprep.subr.mxu0 0.0
    %2552 = vmatpush1.msra.mxu0 0.0
    %2553 = vmatprep.subr.mxu0 0.0
    %2554 = vmatpush1.msra.mxu0 0.0
    %2555 = vmatprep.subr.mxu0 0.0
    %2556 = vmatpush1.msra.mxu0 0.0
    %2557 = vmatprep.subr.mxu0 0.0
    %2558 = vmatpush1.msra.mxu0 0.0
    %2559 = vmatprep.subr.mxu0 0.0
    %2560 = vmatpush1.msra.mxu0 0.0
    %2561 = vmatprep.subr.mxu0 0.0
    %2562 = vmatpush1.msra.mxu0 0.0
    %2563 = vmatprep.subr.mxu0 0.0
    %2564 = vmatpush1.msra.mxu0 0.0
    %2565 = vmatprep.subr.mxu0 0.0
    %2566 = vmatpush1.msra.mxu0 0.0
    %2567 = vmatprep.subr.mxu0 0.0
    %2568 = vmatpush1.msra.mxu0 0.0
    %2569 = vmatprep.subr.mxu0 0.0
    %2570 = vmatpush1.msra.mxu0 0.0
    %2571 = vmatprep.subr.mxu0 0.0
    %2572 = vmatpush1.msra.mxu0 0.0
    %2573 = vmatprep.subr.mxu0 0.0
    %2574 = vmatpush1.msra.mxu0 0.0
    %2575 = vmatprep.subr.mxu0 0.0
    %2576 = vmatpush1.msra.mxu0 0.0
    %2577 = vmatprep.subr.mxu0 0.0
    %2578 = vmatpush1.msra.mxu0 0.0
    %2579 = vmatprep.subr.mxu0 0.0
    %2580 = vmatpush1.msra.mxu0 0.0
    %2581 = vmatprep.mubr.f32.mxu0 0.0
    %2582 = vmatmul.mubr.f32.gmra.mrb[0].mxu0 %v2512
    %v2583 = vpop.f32.mrb[0].mxu0
    %v2584 = vadd.f32 %v2509, %v2583
    %v2585 = vpop.f32.mrb[0].mxu0
    %2586 = vmatprep.mubr.f32.mxu0 0.0
    %2587 = vmatmul.mubr.f32.gmra.mrb[0].mxu0 %v2515
    %v2588 = vpop.f32.mrb[0].mxu0
    %v2589 = vadd.f32 %v2509, %v2588
    %v2590 = vpop.f32.mrb[0].mxu0
    %2591 = vdwg.mxu0
    %v2592 = vadd.f32 %v2402, %v2584
    %v2593 = vadd.f32 %v2403, %v2589
    %v2594 = vsel %vm95, %v2592, 0.0
    %2595 = vadd.xlane.f32.xlu0 %v2594
    %v2596 = vpop.xlane.xlu0 %2595
    %v2597 = vsel %vm95, %v2593, 0.0
    %2598 = vadd.xlane.f32.xlu0 %v2597
    %v2599 = vpop.xlane.xlu0 %2598
    %v2600 = vmul.f32 %v2596, %v2371
    %v2601 = vmul.f32 %v2599, %v2371
    %v2602 = vsub.f32 %v2592, %v2600
    %v2603 = vsub.f32 %v2593, %v2601
    %v2604 = vmul.f32 %v2602, %v2602
    %v2605 = vmul.f32 %v2603, %v2603
    %v2606 = vsel %vm95, %v2604, 0.0
    %2607 = vadd.xlane.f32.xlu0 %v2606
    %v2608 = vpop.xlane.xlu0 %2607
    %v2609 = vsel %vm95, %v2605, 0.0
    %2610 = vadd.xlane.f32.xlu0 %v2609
    %v2611 = vpop.xlane.xlu0 %2610
    %v2612 = vmul.f32 %v2608, %v2371
    %v2613 = vmul.f32 %v2611, %v2371
    %v2614 = vadd.f32 %v2612, 1e-05
    %v2615 = vadd.f32 %v2613, 1e-05
    %v2616 = vrsqrt.pop %v2614
    %v2617 = vrsqrt.pop %v2615
    %v2618 = vmul.f32 %v2602, %v2616
    %v2619 = vmul.f32 %v2603, %v2617
    %v2620 = vlaneseq
    %v2621 = vshrl.u32 %v2620, 7
    %v2622 = vsub.s32 5, %v2621
    %v2623 = vrot.slane %v81, %v2622
    %v2624 = vmul.f32 %v2618, %v2623
    %v2625 = vmul.f32 %v2619, %v2623
    %v2626 = vlaneseq
    %v2627 = vshrl.u32 %v2626, 7
    %v2628 = vsub.s32 6, %v2627
    %v2629 = vrot.slane %v81, %v2628
    %v2630 = vadd.f32 %v2624, %v2629
    %v2631 = vadd.f32 %v2625, %v2629
    %2632 = vst.msk [vmem:[#allocation8] sm:$0xff] %vm95, %v2630
    %2633 = vst.msk [vmem:[#allocation8 + $0x8] sm:$0xff] %vm95, %v2631
    // Predicated region
    $region54: #{tpu_custom_call.1} parent=1 // pred_check
      _
    $region55: #{tpu_custom_call.1} parent=1 // pred_check_branch
      %2635 = sbr.rel (0) target = $region57
    $region56: #{tpu_custom_call.1} parent=1 // pred_region
      %s2637 = ssub.s32 256, 256
      %2638 = vsyncadd [#allocation4], %s2637
      %s2639 = sshll.u32 [#allocation8], 4
      %s2640 = int_to_ptr.vmem [resolvable:$true] %s2639
      %2645 = dma.vmem_to_hbm [thread:$0]  %s2640, 256, %s10, [#allocation4], 128, 128, 8
    $region57: #{tpu_custom_call.1} parent=1 // pred_fallthru
      _
    // Predicated region
    $region58: #{tpu_custom_call.1} parent=1 // pred_check
      _
    $region59: #{tpu_custom_call.1} parent=1 // pred_check_branch
      %2647 = sbr.rel (0) target = $region61
    $region60: #{tpu_custom_call.1} parent=1 // pred_region
      %2648 = dma.done [#allocation4], 256
    $region61: #{tpu_custom_call.1} parent=1 // pred_fallthru
      _
    %2649 = vsyncpa [#allocation3], 1
    %2650 = vsyncpa [#allocation6], 1
    %2651 = vsyncpa [#allocation4], 1

</llo_original>
